<compile_context>
chip_gen: v5e
topology: v5e:2x2
jax: 0.10.0
libtpu: 0.0.40
codegen_flags: <defaults>
</compile_context>

<pallas_src>
import jax
import jax.numpy as jnp
from jax.experimental import pallas as pl
from jax.experimental.pallas import tpu as pltpu

_EPS = 1e-5
_NPAD = 128  # fc output features padded to one full lane register


# ----------------------------------------------------------------------------
# Small helpers
# ----------------------------------------------------------------------------

def _sign(x):
    """torch.sign semantics: sign(0) == 0."""
    one = jnp.ones((), x.dtype)
    zero = jnp.zeros((), x.dtype)
    return jnp.where(x > 0, one, jnp.where(x < 0, -one, zero))


def _fold_bn(bn, bias=None, eps=_EPS):
    """Inference BatchNorm folded to per-feature affine; fp bias folded in too."""
    scale = bn["gamma"] / jnp.sqrt(bn["var"] + eps)
    shift = bn["beta"] - bn["mean"] * scale
    if bias is not None:
        shift = shift + bias * scale
    return scale.astype(jnp.float32), shift.astype(jnp.float32)


def _pad_last(x, n):
    pad = n - x.shape[-1]
    if pad == 0:
        return x
    return jnp.pad(x, [(0, 0)] * (x.ndim - 1) + [(0, pad)])


def _pick_tile_m(m, cap=1024):
    """Row-tile size for the fc stage (full block at small batch)."""
    if m <= cap:
        return m
    for cand in range(cap, 7, -8):
        if m % cand == 0:
            return cand
    return cap


def _pick_images_per_block(n):
    """Images handled per grid step for the conv stages.
    Keeps >=2 grid steps whenever n >= 2 (v7x megacore) and groups images at
    larger batch so v5e/v6e don't pay per-step overhead."""
    if n < 2:
        return 1
    cap = max(1, min(8, n // 2))
    for d in range(cap, 0, -1):
        if n % d == 0:
            return d
    return 1


# ----------------------------------------------------------------------------
# Pallas kernels
# ----------------------------------------------------------------------------

def _make_conv_kernel(bt, binarize_out):
    """Fused conv (as 4 pool-tap matmuls) + BN-affine + tanh + 2x2 maxpool
    (+ optional output binarization).  Everything is f32 until the store.

    a_ref     : (4*bt, K, Q) bf16  - reordered im2col patches; rows 4*b..4*b+3
                are the 4 pooling taps of image b, each (K, Q=Ho*Wo).
    w_ref     : (Cout, K)   bf16   - binarized conv weight.
    scale/shift: (Cout, 1)  f32    - folded BatchNorm affine.
    o_ref     : (bt, Cout, Q)      - pooled activation, channel-major.
    """
    def kernel(a_ref, w_ref, scale_ref, shift_ref, o_ref):
        w = w_ref[...]
        scale = scale_ref[...]
        shift = shift_ref[...]
        for b in range(bt):
            pooled = None
            for t in range(4):
                z = jnp.dot(w, a_ref[4 * b + t],
                            preferred_element_type=jnp.float32)      # (Cout, Q) f32
                y = jnp.tanh(z * scale + shift)
                pooled = y if pooled is None else jnp.maximum(pooled, y)
            if binarize_out:
                pooled = _sign(pooled)
            o_ref[b] = pooled.astype(o_ref.dtype)
    return kernel


def conv_bn_tanh_pool(patches, w, scale, shift, *, n_images, binarize_out,
                      out_dtype=jnp.bfloat16):
    R, K, Q = patches.shape                  # R == 4 * n_images
    assert R == 4 * n_images
    Cout = w.shape[0]
    bt = _pick_images_per_block(n_images)
    return pl.pallas_call(
        _make_conv_kernel(bt, binarize_out),
        out_shape=jax.ShapeDtypeStruct((n_images, Cout, Q), out_dtype),
        grid=(n_images // bt,),
        in_specs=[pl.BlockSpec((4 * bt, K, Q), lambda i: (i, 0, 0)),
                  pl.BlockSpec((Cout, K), lambda i: (0, 0)),
                  pl.BlockSpec((Cout, 1), lambda i: (0, 0)),
                  pl.BlockSpec((Cout, 1), lambda i: (0, 0))],
        out_specs=pl.BlockSpec((bt, Cout, Q), lambda i: (i, 0, 0)),
        compiler_params=pltpu.CompilerParams(dimension_semantics=("parallel",)),
    )(patches, w,
      scale.reshape(Cout, 1).astype(jnp.float32),
      shift.reshape(Cout, 1).astype(jnp.float32))


def _make_fc_kernel(n_valid):
    """Fused fc1 + bn3 + tanh + (binarize) + fc2 + bn4 + log-softmax.
    Inter-layer activation stays in f32 vregs; only the final (M,128) log-probs
    hit HBM.  Lanes >= n_valid of the output hold -inf (sliced off outside)."""
    def kernel(a_ref, w3_ref, s3_ref, b3_ref, w4_ref, s4_ref, b4_ref, o_ref):
        h = jnp.dot(a_ref[...], w3_ref[...], preferred_element_type=jnp.float32)
        h = jnp.tanh(h * s3_ref[...] + b3_ref[...])          # (tm, 128) f32
        hb = _sign(h).astype(jnp.bfloat16)                    # BinarizeLinear input (100 != 784)
        z = jnp.dot(hb, w4_ref[...], preferred_element_type=jnp.float32)
        z = z * s4_ref[...] + b4_ref[...]
        lane = jax.lax.broadcasted_iota(jnp.int32, z.shape, 1)
        valid = lane < n_valid
        z = jnp.where(valid, z, -jnp.inf)                     # ignore padded columns
        m = jnp.max(z, axis=-1, keepdims=True)
        e = jnp.where(valid, jnp.exp(z - m), 0.0)
        s = jnp.sum(e, axis=-1, keepdims=True)
        o_ref[...] = ((z - m) - jnp.log(s)).astype(o_ref.dtype)
    return kernel


def fc_head(a, w3, s3, b3, w4, s4, b4, *, n_valid):
    M, K = a.shape
    NP = w3.shape[1]
    assert w4.shape == (NP, NP)
    tm = _pick_tile_m(M)
    return pl.pallas_call(
        _make_fc_kernel(n_valid),
        out_shape=jax.ShapeDtypeStruct((M, NP), jnp.float32),
        grid=(pl.cdiv(M, tm),),
        in_specs=[pl.BlockSpec((tm, K), lambda i: (i, 0)),
                  pl.BlockSpec((K, NP), lambda i: (0, 0)),
                  pl.BlockSpec((1, NP), lambda i: (0, 0)),
                  pl.BlockSpec((1, NP), lambda i: (0, 0)),
                  pl.BlockSpec((NP, NP), lambda i: (0, 0)),
                  pl.BlockSpec((1, NP), lambda i: (0, 0)),
                  pl.BlockSpec((1, NP), lambda i: (0, 0))],
        out_specs=pl.BlockSpec((tm, NP), lambda i: (i, 0)),
        compiler_params=pltpu.CompilerParams(dimension_semantics=("parallel",)),
    )(a, w3,
      s3.astype(jnp.float32), b3.astype(jnp.float32),
      w4,
      s4.astype(jnp.float32), b4.astype(jnp.float32))


# ----------------------------------------------------------------------------
# JAX glue: pool-tap-grouped im2col (layout only; the hot path is in Pallas)
# ----------------------------------------------------------------------------

def _pool_conv_patches(xpad, H, W):
    """3x3/stride-1 conv patches, grouped by the 2x2/stride-2 pooling tap and
    ordered so the Pallas kernel can pool with a max over 4 contiguous chunks.

    xpad : (N, Cin, H+2, W+2)   (already zero-padded by 1)
    out  : (N*4, Cin*9, (H//2)*(W//2))
           rows 4*n + (2*ph + pw); K index order = (ci, dh, dw) which matches
           torch_weight.reshape(Cout, Cin*9).
    """
    N, Cin, Hp, Wp = xpad.shape
    Ho, Wo = H // 2, W // 2
    taps = []
    for ph in range(2):
        for pw in range(2):
            ks = []
            for dh in range(3):
                for dw in range(3):
                    sl = jax.lax.slice(
                        xpad,
                        (0, 0, ph + dh, pw + dw),
                        (N, Cin, ph + dh + 2 * Ho - 1, pw + dw + 2 * Wo - 1),
                        (1, 1, 2, 2))                       # (N, Cin, Ho, Wo)
                    ks.append(sl)
            k = jnp.stack(ks, axis=2)                       # (N, Cin, 9, Ho, Wo)
            taps.append(k.reshape(N, Cin * 9, Ho * Wo))
    p = jnp.stack(taps, axis=1)                             # (N, 4, Cin*9, Ho*Wo)
    return p.reshape(N * 4, Cin * 9, Ho * Wo)


# ----------------------------------------------------------------------------
# Parameters (deterministic, synthetic)
# ----------------------------------------------------------------------------

def init_params(key):
    ks = jax.random.split(key, 24)
    p = {}
    p["conv1_w"] = 0.1 * jax.random.normal(ks[0], (16, 1, 3, 3), jnp.float32)
    p["conv2_w"] = 0.1 * jax.random.normal(ks[1], (16, 16, 3, 3), jnp.float32)
    p["fc1_w"] = 0.05 * jax.random.normal(ks[2], (100, 784), jnp.float32)
    p["fc1_b"] = 0.05 * jax.random.normal(ks[3], (100,), jnp.float32)
    p["fc2_w"] = 0.05 * jax.random.normal(ks[4], (10, 100), jnp.float32)
    p["fc2_b"] = 0.05 * jax.random.normal(ks[5], (10,), jnp.float32)

    def bn(kg, kb, km, kv, n):
        return dict(
            gamma=1.0 + 0.1 * jax.random.normal(kg, (n,), jnp.float32),
            beta=0.1 * jax.random.normal(kb, (n,), jnp.float32),
            mean=0.1 * jax.random.normal(km, (n,), jnp.float32),
            var=0.5 + jnp.abs(jax.random.normal(kv, (n,), jnp.float32)),
        )

    p["bn1"] = bn(ks[6], ks[7], ks[8], ks[9], 16)
    p["bn2"] = bn(ks[10], ks[11], ks[12], ks[13], 16)
    p["bn3"] = bn(ks[14], ks[15], ks[16], ks[17], 100)
    p["bn4"] = bn(ks[18], ks[19], ks[20], ks[21], 10)
    return p


# ----------------------------------------------------------------------------
# Forward pass (mirrors Net.forward)
# ----------------------------------------------------------------------------

def net_forward(x, p):
    x = x.reshape(-1, 1, 28, 28).astype(jnp.float32)          # x.view(-1, 1, 28, 28)
    N = x.shape[0]

    # ---- conv1 (binarized input+weight) + bn1 + tanh + maxpool1, output pre-binarized
    #      (== the input binarization of BinarizeConv2d conv2; sign/max commute and
    #       the binarized values feed only conv2).
    xb = _sign(x).astype(jnp.bfloat16)                        # exact +-1/0 in bf16
    xpad = jnp.pad(xb, ((0, 0), (0, 0), (1, 1), (1, 1)))
    p1 = _pool_conv_patches(xpad, 28, 28)                     # (N*4, 9, 196)
    w1 = _sign(p["conv1_w"]).reshape(16, 9).astype(jnp.bfloat16)
    s1, b1 = _fold_bn(p["bn1"])
    y1 = conv_bn_tanh_pool(p1, w1, s1, b1, n_images=N, binarize_out=True)   # (N,16,196)

    # ---- conv2 (binarized input+weight) + bn2 + tanh + maxpool2
    y1 = y1.reshape(N, 16, 14, 14)
    y1pad = jnp.pad(y1, ((0, 0), (0, 0), (1, 1), (1, 1)))
    p2 = _pool_conv_patches(y1pad, 14, 14)                    # (N*4, 144, 49)
    w2 = _sign(p["conv2_w"]).reshape(16, 144).astype(jnp.bfloat16)
    s2, b2 = _fold_bn(p["bn2"])
    y2 = conv_bn_tanh_pool(p2, w2, s2, b2, n_images=N, binarize_out=False)  # (N,16,49)

    # ---- flatten: conv output is already channel-major, so this matches
    #      torch's x.view(-1, 7*7*16) with a free contiguous reshape.
    feats = y2.reshape(N, 16 * 7 * 7)                         # (N, 784) bf16

    # ---- fc1 (input NOT binarized) + bn3 + tanh + fc2 (input binarized) + bn4 + logsoftmax
    w3 = _pad_last(_sign(p["fc1_w"]).T, _NPAD).astype(jnp.bfloat16)          # (784, 128)
    s3, b3 = _fold_bn(p["bn3"], bias=p["fc1_b"])
    s3 = _pad_last(s3.reshape(1, -1), _NPAD)
    b3 = _pad_last(b3.reshape(1, -1), _NPAD)

    w4 = _sign(p["fc2_w"]).T                                                  # (100, 10)
    w4 = jnp.pad(w4, ((0, _NPAD - 100), (0, _NPAD - 10))).astype(jnp.bfloat16)  # (128,128)
    s4, b4 = _fold_bn(p["bn4"], bias=p["fc2_b"])
    s4 = _pad_last(s4.reshape(1, -1), _NPAD)
    b4 = _pad_last(b4.reshape(1, -1), _NPAD)

    out = fc_head(feats, w3, s3, b3, w4, s4, b4, n_valid=10)                  # (N, 128) f32
    return out[:, :10]                                                        # LogSoftmax(dim=1)


if __name__ == "__main__":
    key = jax.random.PRNGKey(0)
    k_in, k_par = jax.random.split(key)
    params = init_params(k_par)
    x = jax.random.normal(k_in, (2, 1, 28, 28), jnp.float32)   # batch=2 MNIST-shaped input

    out = jax.jit(net_forward)(x, params)
    out = jax.block_until_ready(out)

    assert out.shape == (2, 10) and out.dtype == jnp.float32
    assert bool(jnp.all(jnp.isfinite(out)))
    # log-softmax rows must (log-)sum to ~1
    assert bool(jnp.all(jnp.abs(jnp.sum(jnp.exp(out), axis=-1) - 1.0) < 1e-3))
    print("KERNEL_OK")
</pallas_src>

<mosaic_0001>
module attributes {stable_mosaic.version = 11 : i64} {
  func.func @kernel(%arg0: i32, %arg1: memref<4x9x196xbf16, #tpu.memory_space<vmem>>, %arg2: memref<16x9xbf16, #tpu.memory_space<vmem>>, %arg3: memref<16x1xf32, #tpu.memory_space<vmem>>, %arg4: memref<16x1xf32, #tpu.memory_space<vmem>>, %arg5: memref<1x16x196xbf16, #tpu.memory_space<vmem>>) attributes {dimension_semantics = [#tpu.dimension_semantics<parallel>], iteration_bounds = array<i64: 2>, scalar_prefetch = 0 : i64, scratch_operands = 0 : i64, tpu.core_type = #tpu.core_type<tc>, window_params = [{transform_indices = @transform_0, window_bounds = array<i64: 4, 9, 196>}, {pipeline_mode = #tpu.pipeline_mode<synchronous>, transform_indices = @transform_1, window_bounds = array<i64: 16, 9>}, {pipeline_mode = #tpu.pipeline_mode<synchronous>, transform_indices = @transform_2, window_bounds = array<i64: 16, 1>}, {pipeline_mode = #tpu.pipeline_mode<synchronous>, transform_indices = @transform_3, window_bounds = array<i64: 16, 1>}, {transform_indices = @transform_4, window_bounds = array<i64: 1, 16, 196>}]} {
    %c0 = arith.constant 0 : index
    %c0_0 = arith.constant 0 : index
    %0 = vector.load %arg2[%c0, %c0_0] : memref<16x9xbf16, #tpu.memory_space<vmem>>, vector<16x9xbf16>
    %c0_1 = arith.constant 0 : index
    %c0_2 = arith.constant 0 : index
    %1 = vector.load %arg3[%c0_1, %c0_2] : memref<16x1xf32, #tpu.memory_space<vmem>>, vector<16x1xf32>
    %c0_3 = arith.constant 0 : index
    %c0_4 = arith.constant 0 : index
    %2 = vector.load %arg4[%c0_3, %c0_4] : memref<16x1xf32, #tpu.memory_space<vmem>>, vector<16x1xf32>
    %c0_5 = arith.constant 0 : index
    %c0_6 = arith.constant 0 : index
    %c0_7 = arith.constant 0 : index
    %3 = vector.load %arg1[%c0_5, %c0_6, %c0_7] : memref<4x9x196xbf16, #tpu.memory_space<vmem>>, vector<1x9x196xbf16>
    %4 = vector.shape_cast %3 : vector<1x9x196xbf16> to vector<9x196xbf16>
    %cst = arith.constant dense<0.000000e+00> : vector<16x196xf32>
    %5 = tpu.matmul %0, %4, %cst {dimension_numbers = #tpu.dot_dimension_numbers<[1], [0], [0], [1], [0, 0, 1, 1], [], []>} : vector<16x9xbf16>, vector<9x196xbf16>, vector<16x196xf32> -> vector<16x196xf32>
    %6 = vector.broadcast %1 : vector<16x1xf32> to vector<16x196xf32>
    %7 = arith.mulf %5, %6 : vector<16x196xf32>
    %8 = vector.broadcast %2 : vector<16x1xf32> to vector<16x196xf32>
    %9 = arith.addf %7, %8 : vector<16x196xf32>
    %10 = math.tanh %9 : vector<16x196xf32>
    %c1 = arith.constant 1 : index
    %c0_8 = arith.constant 0 : index
    %c0_9 = arith.constant 0 : index
    %11 = vector.load %arg1[%c1, %c0_8, %c0_9] : memref<4x9x196xbf16, #tpu.memory_space<vmem>>, vector<1x9x196xbf16>
    %12 = vector.shape_cast %11 : vector<1x9x196xbf16> to vector<9x196xbf16>
    %cst_10 = arith.constant dense<0.000000e+00> : vector<16x196xf32>
    %13 = tpu.matmul %0, %12, %cst_10 {dimension_numbers = #tpu.dot_dimension_numbers<[1], [0], [0], [1], [0, 0, 1, 1], [], []>} : vector<16x9xbf16>, vector<9x196xbf16>, vector<16x196xf32> -> vector<16x196xf32>
    %14 = vector.broadcast %1 : vector<16x1xf32> to vector<16x196xf32>
    %15 = arith.mulf %13, %14 : vector<16x196xf32>
    %16 = vector.broadcast %2 : vector<16x1xf32> to vector<16x196xf32>
    %17 = arith.addf %15, %16 : vector<16x196xf32>
    %18 = math.tanh %17 : vector<16x196xf32>
    %19 = arith.maximumf %10, %18 : vector<16x196xf32>
    %c2 = arith.constant 2 : index
    %c0_11 = arith.constant 0 : index
    %c0_12 = arith.constant 0 : index
    %20 = vector.load %arg1[%c2, %c0_11, %c0_12] : memref<4x9x196xbf16, #tpu.memory_space<vmem>>, vector<1x9x196xbf16>
    %21 = vector.shape_cast %20 : vector<1x9x196xbf16> to vector<9x196xbf16>
    %cst_13 = arith.constant dense<0.000000e+00> : vector<16x196xf32>
    %22 = tpu.matmul %0, %21, %cst_13 {dimension_numbers = #tpu.dot_dimension_numbers<[1], [0], [0], [1], [0, 0, 1, 1], [], []>} : vector<16x9xbf16>, vector<9x196xbf16>, vector<16x196xf32> -> vector<16x196xf32>
    %23 = vector.broadcast %1 : vector<16x1xf32> to vector<16x196xf32>
    %24 = arith.mulf %22, %23 : vector<16x196xf32>
    %25 = vector.broadcast %2 : vector<16x1xf32> to vector<16x196xf32>
    %26 = arith.addf %24, %25 : vector<16x196xf32>
    %27 = math.tanh %26 : vector<16x196xf32>
    %28 = arith.maximumf %19, %27 : vector<16x196xf32>
    %c3 = arith.constant 3 : index
    %c0_14 = arith.constant 0 : index
    %c0_15 = arith.constant 0 : index
    %29 = vector.load %arg1[%c3, %c0_14, %c0_15] : memref<4x9x196xbf16, #tpu.memory_space<vmem>>, vector<1x9x196xbf16>
    %30 = vector.shape_cast %29 : vector<1x9x196xbf16> to vector<9x196xbf16>
    %cst_16 = arith.constant dense<0.000000e+00> : vector<16x196xf32>
    %31 = tpu.matmul %0, %30, %cst_16 {dimension_numbers = #tpu.dot_dimension_numbers<[1], [0], [0], [1], [0, 0, 1, 1], [], []>} : vector<16x9xbf16>, vector<9x196xbf16>, vector<16x196xf32> -> vector<16x196xf32>
    %32 = vector.broadcast %1 : vector<16x1xf32> to vector<16x196xf32>
    %33 = arith.mulf %31, %32 : vector<16x196xf32>
    %34 = vector.broadcast %2 : vector<16x1xf32> to vector<16x196xf32>
    %35 = arith.addf %33, %34 : vector<16x196xf32>
    %36 = math.tanh %35 : vector<16x196xf32>
    %37 = arith.maximumf %28, %36 : vector<16x196xf32>
    %cst_17 = arith.constant 0.000000e+00 : f32
    %38 = vector.broadcast %cst_17 : f32 to vector<16x196xf32>
    %39 = arith.cmpf ogt, %37, %38 : vector<16x196xf32>
    %cst_18 = arith.constant 0.000000e+00 : f32
    %40 = vector.broadcast %cst_18 : f32 to vector<16x196xf32>
    %41 = arith.cmpf olt, %37, %40 : vector<16x196xf32>
    %cst_19 = arith.constant 0.000000e+00 : f32
    %cst_20 = arith.constant 1.000000e+00 : f32
    %42 = arith.subf %cst_19, %cst_20 : f32
    %cst_21 = arith.constant 0.000000e+00 : f32
    %43 = vector.broadcast %42 : f32 to vector<16x196xf32>
    %44 = vector.broadcast %cst_21 : f32 to vector<16x196xf32>
    %45 = arith.select %41, %43, %44 : vector<16x196xi1>, vector<16x196xf32>
    %cst_22 = arith.constant 1.000000e+00 : f32
    %46 = vector.broadcast %cst_22 : f32 to vector<16x196xf32>
    %47 = arith.select %39, %46, %45 : vector<16x196xi1>, vector<16x196xf32>
    %48 = arith.truncf %47 : vector<16x196xf32> to vector<16x196xbf16>
    %c0_23 = arith.constant 0 : index
    %c0_24 = arith.constant 0 : index
    %c0_25 = arith.constant 0 : index
    %49 = vector.load %arg5[%c0_23, %c0_24, %c0_25] : memref<1x16x196xbf16, #tpu.memory_space<vmem>>, vector<1x16x196xbf16>
    %50 = vector.shape_cast %49 : vector<1x16x196xbf16> to vector<16x196xbf16>
    %51 = vector.shape_cast %48 : vector<16x196xbf16> to vector<1x16x196xbf16>
    tpu.vector_store %arg5[%c0_23, %c0_24, %c0_25], %51 {strides = array<i32>} : memref<1x16x196xbf16, #tpu.memory_space<vmem>>, vector<1x16x196xbf16>,
    return
  }
  func.func @transform_0(%arg0: i32) -> (i32, i32, i32) {
    %c0_i32 = arith.constant 0 : i32
    %c0_i32_0 = arith.constant 0 : i32
    %c0_i32_1 = arith.constant 0 : i32
    return %arg0, %c0_i32, %c0_i32_0 : i32, i32, i32
  }
  func.func @transform_1(%arg0: i32) -> (i32, i32) {
    %c0_i32 = arith.constant 0 : i32
    %c0_i32_0 = arith.constant 0 : i32
    %c0_i32_1 = arith.constant 0 : i32
    return %c0_i32, %c0_i32_0 : i32, i32
  }
  func.func @transform_2(%arg0: i32) -> (i32, i32) {
    %c0_i32 = arith.constant 0 : i32
    %c0_i32_0 = arith.constant 0 : i32
    %c0_i32_1 = arith.constant 0 : i32
    return %c0_i32, %c0_i32_0 : i32, i32
  }
  func.func @transform_3(%arg0: i32) -> (i32, i32) {
    %c0_i32 = arith.constant 0 : i32
    %c0_i32_0 = arith.constant 0 : i32
    %c0_i32_1 = arith.constant 0 : i32
    return %c0_i32, %c0_i32_0 : i32, i32
  }
  func.func @transform_4(%arg0: i32) -> (i32, i32, i32) {
    %c0_i32 = arith.constant 0 : i32
    %c0_i32_0 = arith.constant 0 : i32
    %c0_i32_1 = arith.constant 0 : i32
    return %arg0, %c0_i32, %c0_i32_0 : i32, i32, i32
  }
}

module attributes {stable_mosaic.version = 11 : i64} {
  func.func @kernel(%arg0: i32, %arg1: memref<4x144x49xbf16, #tpu.memory_space<vmem>>, %arg2: memref<16x144xbf16, #tpu.memory_space<vmem>>, %arg3: memref<16x1xf32, #tpu.memory_space<vmem>>, %arg4: memref<16x1xf32, #tpu.memory_space<vmem>>, %arg5: memref<1x16x49xbf16, #tpu.memory_space<vmem>>) attributes {dimension_semantics = [#tpu.dimension_semantics<parallel>], iteration_bounds = array<i64: 2>, scalar_prefetch = 0 : i64, scratch_operands = 0 : i64, tpu.core_type = #tpu.core_type<tc>, window_params = [{transform_indices = @transform_0, window_bounds = array<i64: 4, 144, 49>}, {pipeline_mode = #tpu.pipeline_mode<synchronous>, transform_indices = @transform_1, window_bounds = array<i64: 16, 144>}, {pipeline_mode = #tpu.pipeline_mode<synchronous>, transform_indices = @transform_2, window_bounds = array<i64: 16, 1>}, {pipeline_mode = #tpu.pipeline_mode<synchronous>, transform_indices = @transform_3, window_bounds = array<i64: 16, 1>}, {transform_indices = @transform_4, window_bounds = array<i64: 1, 16, 49>}]} {
    %c0 = arith.constant 0 : index
    %c0_0 = arith.constant 0 : index
    %0 = vector.load %arg2[%c0, %c0_0] : memref<16x144xbf16, #tpu.memory_space<vmem>>, vector<16x144xbf16>
    %c0_1 = arith.constant 0 : index
    %c0_2 = arith.constant 0 : index
    %1 = vector.load %arg3[%c0_1, %c0_2] : memref<16x1xf32, #tpu.memory_space<vmem>>, vector<16x1xf32>
    %c0_3 = arith.constant 0 : index
    %c0_4 = arith.constant 0 : index
    %2 = vector.load %arg4[%c0_3, %c0_4] : memref<16x1xf32, #tpu.memory_space<vmem>>, vector<16x1xf32>
    %c0_5 = arith.constant 0 : index
    %c0_6 = arith.constant 0 : index
    %c0_7 = arith.constant 0 : index
    %3 = vector.load %arg1[%c0_5, %c0_6, %c0_7] : memref<4x144x49xbf16, #tpu.memory_space<vmem>>, vector<1x144x49xbf16>
    %4 = vector.shape_cast %3 : vector<1x144x49xbf16> to vector<144x49xbf16>
    %cst = arith.constant dense<0.000000e+00> : vector<16x49xf32>
    %5 = tpu.matmul %0, %4, %cst {dimension_numbers = #tpu.dot_dimension_numbers<[1], [0], [0], [1], [0, 0, 1, 1], [], []>} : vector<16x144xbf16>, vector<144x49xbf16>, vector<16x49xf32> -> vector<16x49xf32>
    %6 = vector.broadcast %1 : vector<16x1xf32> to vector<16x49xf32>
    %7 = arith.mulf %5, %6 : vector<16x49xf32>
    %8 = vector.broadcast %2 : vector<16x1xf32> to vector<16x49xf32>
    %9 = arith.addf %7, %8 : vector<16x49xf32>
    %10 = math.tanh %9 : vector<16x49xf32>
    %c1 = arith.constant 1 : index
    %c0_8 = arith.constant 0 : index
    %c0_9 = arith.constant 0 : index
    %11 = vector.load %arg1[%c1, %c0_8, %c0_9] : memref<4x144x49xbf16, #tpu.memory_space<vmem>>, vector<1x144x49xbf16>
    %12 = vector.shape_cast %11 : vector<1x144x49xbf16> to vector<144x49xbf16>
    %cst_10 = arith.constant dense<0.000000e+00> : vector<16x49xf32>
    %13 = tpu.matmul %0, %12, %cst_10 {dimension_numbers = #tpu.dot_dimension_numbers<[1], [0], [0], [1], [0, 0, 1, 1], [], []>} : vector<16x144xbf16>, vector<144x49xbf16>, vector<16x49xf32> -> vector<16x49xf32>
    %14 = vector.broadcast %1 : vector<16x1xf32> to vector<16x49xf32>
    %15 = arith.mulf %13, %14 : vector<16x49xf32>
    %16 = vector.broadcast %2 : vector<16x1xf32> to vector<16x49xf32>
    %17 = arith.addf %15, %16 : vector<16x49xf32>
    %18 = math.tanh %17 : vector<16x49xf32>
    %19 = arith.maximumf %10, %18 : vector<16x49xf32>
    %c2 = arith.constant 2 : index
    %c0_11 = arith.constant 0 : index
    %c0_12 = arith.constant 0 : index
    %20 = vector.load %arg1[%c2, %c0_11, %c0_12] : memref<4x144x49xbf16, #tpu.memory_space<vmem>>, vector<1x144x49xbf16>
    %21 = vector.shape_cast %20 : vector<1x144x49xbf16> to vector<144x49xbf16>
    %cst_13 = arith.constant dense<0.000000e+00> : vector<16x49xf32>
    %22 = tpu.matmul %0, %21, %cst_13 {dimension_numbers = #tpu.dot_dimension_numbers<[1], [0], [0], [1], [0, 0, 1, 1], [], []>} : vector<16x144xbf16>, vector<144x49xbf16>, vector<16x49xf32> -> vector<16x49xf32>
    %23 = vector.broadcast %1 : vector<16x1xf32> to vector<16x49xf32>
    %24 = arith.mulf %22, %23 : vector<16x49xf32>
    %25 = vector.broadcast %2 : vector<16x1xf32> to vector<16x49xf32>
    %26 = arith.addf %24, %25 : vector<16x49xf32>
    %27 = math.tanh %26 : vector<16x49xf32>
    %28 = arith.maximumf %19, %27 : vector<16x49xf32>
    %c3 = arith.constant 3 : index
    %c0_14 = arith.constant 0 : index
    %c0_15 = arith.constant 0 : index
    %29 = vector.load %arg1[%c3, %c0_14, %c0_15] : memref<4x144x49xbf16, #tpu.memory_space<vmem>>, vector<1x144x49xbf16>
    %30 = vector.shape_cast %29 : vector<1x144x49xbf16> to vector<144x49xbf16>
    %cst_16 = arith.constant dense<0.000000e+00> : vector<16x49xf32>
    %31 = tpu.matmul %0, %30, %cst_16 {dimension_numbers = #tpu.dot_dimension_numbers<[1], [0], [0], [1], [0, 0, 1, 1], [], []>} : vector<16x144xbf16>, vector<144x49xbf16>, vector<16x49xf32> -> vector<16x49xf32>
    %32 = vector.broadcast %1 : vector<16x1xf32> to vector<16x49xf32>
    %33 = arith.mulf %31, %32 : vector<16x49xf32>
    %34 = vector.broadcast %2 : vector<16x1xf32> to vector<16x49xf32>
    %35 = arith.addf %33, %34 : vector<16x49xf32>
    %36 = math.tanh %35 : vector<16x49xf32>
    %37 = arith.maximumf %28, %36 : vector<16x49xf32>
    %38 = arith.truncf %37 : vector<16x49xf32> to vector<16x49xbf16>
    %c0_17 = arith.constant 0 : index
    %c0_18 = arith.constant 0 : index
    %c0_19 = arith.constant 0 : index
    %39 = vector.load %arg5[%c0_17, %c0_18, %c0_19] : memref<1x16x49xbf16, #tpu.memory_space<vmem>>, vector<1x16x49xbf16>
    %40 = vector.shape_cast %39 : vector<1x16x49xbf16> to vector<16x49xbf16>
    %41 = vector.shape_cast %38 : vector<16x49xbf16> to vector<1x16x49xbf16>
    tpu.vector_store %arg5[%c0_17, %c0_18, %c0_19], %41 {strides = array<i32>} : memref<1x16x49xbf16, #tpu.memory_space<vmem>>, vector<1x16x49xbf16>,
    return
  }
  func.func @transform_0(%arg0: i32) -> (i32, i32, i32) {
    %c0_i32 = arith.constant 0 : i32
    %c0_i32_0 = arith.constant 0 : i32
    %c0_i32_1 = arith.constant 0 : i32
    return %arg0, %c0_i32, %c0_i32_0 : i32, i32, i32
  }
  func.func @transform_1(%arg0: i32) -> (i32, i32) {
    %c0_i32 = arith.constant 0 : i32
    %c0_i32_0 = arith.constant 0 : i32
    %c0_i32_1 = arith.constant 0 : i32
    return %c0_i32, %c0_i32_0 : i32, i32
  }
  func.func @transform_2(%arg0: i32) -> (i32, i32) {
    %c0_i32 = arith.constant 0 : i32
    %c0_i32_0 = arith.constant 0 : i32
    %c0_i32_1 = arith.constant 0 : i32
    return %c0_i32, %c0_i32_0 : i32, i32
  }
  func.func @transform_3(%arg0: i32) -> (i32, i32) {
    %c0_i32 = arith.constant 0 : i32
    %c0_i32_0 = arith.constant 0 : i32
    %c0_i32_1 = arith.constant 0 : i32
    return %c0_i32, %c0_i32_0 : i32, i32
  }
  func.func @transform_4(%arg0: i32) -> (i32, i32, i32) {
    %c0_i32 = arith.constant 0 : i32
    %c0_i32_0 = arith.constant 0 : i32
    %c0_i32_1 = arith.constant 0 : i32
    return %arg0, %c0_i32, %c0_i32_0 : i32, i32, i32
  }
}

module attributes {stable_mosaic.version = 11 : i64} {
  func.func @kernel(%arg0: i32, %arg1: memref<2x784xbf16, #tpu.memory_space<vmem>>, %arg2: memref<784x128xbf16, #tpu.memory_space<vmem>>, %arg3: memref<1x128xf32, #tpu.memory_space<vmem>>, %arg4: memref<1x128xf32, #tpu.memory_space<vmem>>, %arg5: memref<128x128xbf16, #tpu.memory_space<vmem>>, %arg6: memref<1x128xf32, #tpu.memory_space<vmem>>, %arg7: memref<1x128xf32, #tpu.memory_space<vmem>>, %arg8: memref<2x128xf32, #tpu.memory_space<vmem>>) attributes {dimension_semantics = [#tpu.dimension_semantics<parallel>], iteration_bounds = array<i64: 1>, scalar_prefetch = 0 : i64, scratch_operands = 0 : i64, tpu.core_type = #tpu.core_type<tc>, window_params = [{transform_indices = @transform_0, window_bounds = array<i64: 2, 784>}, {pipeline_mode = #tpu.pipeline_mode<synchronous>, transform_indices = @transform_1, window_bounds = array<i64: 784, 128>}, {pipeline_mode = #tpu.pipeline_mode<synchronous>, transform_indices = @transform_2, window_bounds = array<i64: 1, 128>}, {pipeline_mode = #tpu.pipeline_mode<synchronous>, transform_indices = @transform_3, window_bounds = array<i64: 1, 128>}, {pipeline_mode = #tpu.pipeline_mode<synchronous>, transform_indices = @transform_4, window_bounds = array<i64: 128, 128>}, {pipeline_mode = #tpu.pipeline_mode<synchronous>, transform_indices = @transform_5, window_bounds = array<i64: 1, 128>}, {pipeline_mode = #tpu.pipeline_mode<synchronous>, transform_indices = @transform_6, window_bounds = array<i64: 1, 128>}, {transform_indices = @transform_7, window_bounds = array<i64: 2, 128>}]} {
    %c0 = arith.constant 0 : index
    %c0_0 = arith.constant 0 : index
    %0 = vector.load %arg1[%c0, %c0_0] : memref<2x784xbf16, #tpu.memory_space<vmem>>, vector<2x784xbf16>
    %c0_1 = arith.constant 0 : index
    %c0_2 = arith.constant 0 : index
    %1 = vector.load %arg2[%c0_1, %c0_2] : memref<784x128xbf16, #tpu.memory_space<vmem>>, vector<784x128xbf16>
    %cst = arith.constant dense<0.000000e+00> : vector<2x128xf32>
    %2 = tpu.matmul %0, %1, %cst {dimension_numbers = #tpu.dot_dimension_numbers<[1], [0], [0], [1], [0, 0, 1, 1], [], []>} : vector<2x784xbf16>, vector<784x128xbf16>, vector<2x128xf32> -> vector<2x128xf32>
    %c0_3 = arith.constant 0 : index
    %c0_4 = arith.constant 0 : index
    %3 = vector.load %arg3[%c0_3, %c0_4] : memref<1x128xf32, #tpu.memory_space<vmem>>, vector<1x128xf32>
    %4 = vector.broadcast %3 : vector<1x128xf32> to vector<2x128xf32>
    %5 = arith.mulf %2, %4 : vector<2x128xf32>
    %c0_5 = arith.constant 0 : index
    %c0_6 = arith.constant 0 : index
    %6 = vector.load %arg4[%c0_5, %c0_6] : memref<1x128xf32, #tpu.memory_space<vmem>>, vector<1x128xf32>
    %7 = vector.broadcast %6 : vector<1x128xf32> to vector<2x128xf32>
    %8 = arith.addf %5, %7 : vector<2x128xf32>
    %9 = math.tanh %8 : vector<2x128xf32>
    %cst_7 = arith.constant 0.000000e+00 : f32
    %10 = vector.broadcast %cst_7 : f32 to vector<2x128xf32>
    %11 = arith.cmpf ogt, %9, %10 : vector<2x128xf32>
    %cst_8 = arith.constant 0.000000e+00 : f32
    %12 = vector.broadcast %cst_8 : f32 to vector<2x128xf32>
    %13 = arith.cmpf olt, %9, %12 : vector<2x128xf32>
    %cst_9 = arith.constant 0.000000e+00 : f32
    %cst_10 = arith.constant 1.000000e+00 : f32
    %14 = arith.subf %cst_9, %cst_10 : f32
    %cst_11 = arith.constant 0.000000e+00 : f32
    %15 = vector.broadcast %14 : f32 to vector<2x128xf32>
    %16 = vector.broadcast %cst_11 : f32 to vector<2x128xf32>
    %17 = arith.select %13, %15, %16 : vector<2x128xi1>, vector<2x128xf32>
    %cst_12 = arith.constant 1.000000e+00 : f32
    %18 = vector.broadcast %cst_12 : f32 to vector<2x128xf32>
    %19 = arith.select %11, %18, %17 : vector<2x128xi1>, vector<2x128xf32>
    %20 = arith.truncf %19 : vector<2x128xf32> to vector<2x128xbf16>
    %c0_13 = arith.constant 0 : index
    %c0_14 = arith.constant 0 : index
    %21 = vector.load %arg5[%c0_13, %c0_14] : memref<128x128xbf16, #tpu.memory_space<vmem>>, vector<128x128xbf16>
    %cst_15 = arith.constant dense<0.000000e+00> : vector<2x128xf32>
    %22 = tpu.matmul %20, %21, %cst_15 {dimension_numbers = #tpu.dot_dimension_numbers<[1], [0], [0], [1], [0, 0, 1, 1], [], []>} : vector<2x128xbf16>, vector<128x128xbf16>, vector<2x128xf32> -> vector<2x128xf32>
    %c0_16 = arith.constant 0 : index
    %c0_17 = arith.constant 0 : index
    %23 = vector.load %arg6[%c0_16, %c0_17] : memref<1x128xf32, #tpu.memory_space<vmem>>, vector<1x128xf32>
    %24 = vector.broadcast %23 : vector<1x128xf32> to vector<2x128xf32>
    %25 = arith.mulf %22, %24 : vector<2x128xf32>
    %c0_18 = arith.constant 0 : index
    %c0_19 = arith.constant 0 : index
    %26 = vector.load %arg7[%c0_18, %c0_19] : memref<1x128xf32, #tpu.memory_space<vmem>>, vector<1x128xf32>
    %27 = vector.broadcast %26 : vector<1x128xf32> to vector<2x128xf32>
    %28 = arith.addf %25, %27 : vector<2x128xf32>
    %29 = tpu.iota {dimensions = array<i32: 1>} : vector<2x128xi32>
    %c10_i32 = arith.constant 10 : i32
    %30 = vector.broadcast %c10_i32 : i32 to vector<2x128xi32>
    %31 = arith.cmpi slt, %29, %30 : vector<2x128xi32>
    %cst_20 = arith.constant 0xFF800000 : f32
    %32 = vector.broadcast %cst_20 : f32 to vector<2x128xf32>
    %33 = arith.select %31, %28, %32 : vector<2x128xi1>, vector<2x128xf32>
    %cst_21 = arith.constant dense<0xFF800000> : vector<2xf32>
    %34 = vector.multi_reduction <maximumf>, %33, %cst_21 [1] : vector<2x128xf32> to vector<2xf32>
    %35 = vector.shape_cast %34 : vector<2xf32> to vector<2x1xf32>
    %36 = vector.broadcast %35 : vector<2x1xf32> to vector<2x128xf32>
    %37 = arith.subf %33, %36 : vector<2x128xf32>
    %38 = math.exp %37 : vector<2x128xf32>
    %cst_22 = arith.constant 0.000000e+00 : f32
    %39 = vector.broadcast %cst_22 : f32 to vector<2x128xf32>
    %40 = arith.select %31, %38, %39 : vector<2x128xi1>, vector<2x128xf32>
    %cst_23 = arith.constant dense<0.000000e+00> : vector<2xf32>
    %41 = vector.multi_reduction <add>, %40, %cst_23 [1] : vector<2x128xf32> to vector<2xf32>
    %42 = vector.shape_cast %41 : vector<2xf32> to vector<2x1xf32>
    %43 = vector.broadcast %35 : vector<2x1xf32> to vector<2x128xf32>
    %44 = arith.subf %33, %43 : vector<2x128xf32>
    %45 = math.log %42 : vector<2x1xf32>
    %46 = vector.broadcast %45 : vector<2x1xf32> to vector<2x128xf32>
    %47 = arith.subf %44, %46 : vector<2x128xf32>
    %c0_24 = arith.constant 0 : index
    %c0_25 = arith.constant 0 : index
    %48 = vector.load %arg8[%c0_24, %c0_25] : memref<2x128xf32, #tpu.memory_space<vmem>>, vector<2x128xf32>
    tpu.vector_store %arg8[%c0_24, %c0_25], %47 {strides = array<i32>} : memref<2x128xf32, #tpu.memory_space<vmem>>, vector<2x128xf32>,
    return
  }
  func.func @transform_0(%arg0: i32) -> (i32, i32) {
    %c0_i32 = arith.constant 0 : i32
    %c0_i32_0 = arith.constant 0 : i32
    return %arg0, %c0_i32 : i32, i32
  }
  func.func @transform_1(%arg0: i32) -> (i32, i32) {
    %c0_i32 = arith.constant 0 : i32
    %c0_i32_0 = arith.constant 0 : i32
    %c0_i32_1 = arith.constant 0 : i32
    return %c0_i32, %c0_i32_0 : i32, i32
  }
  func.func @transform_2(%arg0: i32) -> (i32, i32) {
    %c0_i32 = arith.constant 0 : i32
    %c0_i32_0 = arith.constant 0 : i32
    %c0_i32_1 = arith.constant 0 : i32
    return %c0_i32, %c0_i32_0 : i32, i32
  }
  func.func @transform_3(%arg0: i32) -> (i32, i32) {
    %c0_i32 = arith.constant 0 : i32
    %c0_i32_0 = arith.constant 0 : i32
    %c0_i32_1 = arith.constant 0 : i32
    return %c0_i32, %c0_i32_0 : i32, i32
  }
  func.func @transform_4(%arg0: i32) -> (i32, i32) {
    %c0_i32 = arith.constant 0 : i32
    %c0_i32_0 = arith.constant 0 : i32
    %c0_i32_1 = arith.constant 0 : i32
    return %c0_i32, %c0_i32_0 : i32, i32
  }
  func.func @transform_5(%arg0: i32) -> (i32, i32) {
    %c0_i32 = arith.constant 0 : i32
    %c0_i32_0 = arith.constant 0 : i32
    %c0_i32_1 = arith.constant 0 : i32
    return %c0_i32, %c0_i32_0 : i32, i32
  }
  func.func @transform_6(%arg0: i32) -> (i32, i32) {
    %c0_i32 = arith.constant 0 : i32
    %c0_i32_0 = arith.constant 0 : i32
    %c0_i32_1 = arith.constant 0 : i32
    return %c0_i32, %c0_i32_0 : i32, i32
  }
  func.func @transform_7(%arg0: i32) -> (i32, i32) {
    %c0_i32 = arith.constant 0 : i32
    %c0_i32_0 = arith.constant 0 : i32
    return %arg0, %c0_i32 : i32, i32
  }
}

</mosaic_0001>

<llo_original>
// kernel: net_forward.3
$region0: #{net_forward.3}
  #allocation0 [shape = 'u32[]', space=smem, size = 0x4, offset = 0x4, fixed_abs, tag = 'smem constant byte address 0x4 - core index']
  #allocation1 [shape = 'u32[72,128]{1,0:T(1,128)}', space=vmem, size = 0x9000, scoped, tag = 'internal scratch']
  %s0 = inlined_call_operand.vmem [shape: bf16[8,9,196], index: 0, kind: input, shape index: {}]
  %s1 = inlined_call_operand.vmem [shape: bf16[16,9], index: 1, kind: input, shape index: {}]
  %s2 = inlined_call_operand.vmem [shape: f32[16,1], index: 2, kind: input, shape index: {}]
  %s3 = inlined_call_operand.vmem [shape: f32[16,1], index: 3, kind: input, shape index: {}]
  %s4 = inlined_call_operand.vmem [shape: bf16[2,16,196], index: 4, kind: output, shape index: {}]
  %s5 = sld [smem:[#allocation0]]
  $region49: #{net_forward.3} parent=0
    _
  %s7 = ssub.s32 1, %s5
  %s8 = scalar_select 0, %s7, %s5
  loop: start=0, step=1, limit=4
  $region2: #{net_forward.3} parent=0 // loop_pre_header
    _
  $region3: #{net_forward.3} parent=0 // loop_header
    %s10 = sphi 0, %s14
    %p11 = scmp.ge.s32.totalorder %s10, 4
    %s20 = sphi 0, %s22
    %s23 = sphi 0, %s20
    %s24 = sphi 0, %s23
    %s40 = sphi 0, %s24
    %s44 = sphi 0, %s44
    %s46 = sphi 0, %s44
    %s47 = sphi 0, %s46
    %s61 = sphi 0, %s47
    %s65 = sphi 0, %s65
    %s67 = sphi 0, %s65
    %s68 = sphi 0, %s67
    %s82 = sphi 0, %s68
    %s86 = sphi 0, %s86
    %s88 = sphi 0, %s86
    %s89 = sphi 0, %s88
    %s103 = sphi 0, %s89
    %s109 = sphi 0, %s111
    %s112 = sphi 0, %s109
    %s113 = sphi 0, %s112
    %s129 = sphi 0, %s113
  $region4: #{net_forward.3} parent=0 // loop_header_branch
    %13 = sbr.rel (%p11) target = $region8
  $region5: #{net_forward.3} parent=0 // loop_body
    %s15 = ssub.s32 %s10, 1
    %s16 = ssub.s32 %s10, 2
    %s17 = sadd.s32 %s10, 1
    %s18 = ssub.s32 %s10, %s17
    %p19 = scmp.eq.s32.totalorder %s18, 0
    %s21 = sadd.s32 %s20, 1
    %s22 = scalar_select %p19, %s20, %s21
    %p25 = pneg %p19
    %p26 = scmp.eq.s32.totalorder %s10, 1
    %p27 = por %p25, %p26
    %p28 = scmp.ne.s32.totalorder %s20, %s23
    %p29 = scmp.eq.s32.totalorder %s10, 0
    %p30 = por %p28, %p29
    %p31 = scmp.ne.s32.totalorder %s20, %s23
    %p32 = scmp.eq.s32.totalorder %s15, 1
    %p33 = por %p31, %p32
    %p34 = scmp.ne.s32.totalorder %s23, %s24
    %p35 = scmp.eq.s32.totalorder %s15, 0
    %p36 = por %p34, %p35
    %p37 = scmp.ne.s32.totalorder %s23, %s24
    %p38 = scmp.eq.s32.totalorder %s16, 1
    %p39 = por %p37, %p38
    %p41 = scmp.ne.s32.totalorder %s24, %s40
    %p42 = scmp.eq.s32.totalorder %s16, 0
    %p43 = por %p41, %p42
    %s45 = sadd.s32 %s44, 1
    %p48 = scmp.eq.s32.totalorder %s10, 1
    %p49 = scmp.ne.s32.totalorder %s44, %s46
    %p50 = scmp.eq.s32.totalorder %s10, 0
    %p51 = por %p49, %p50
    %p52 = scmp.ne.s32.totalorder %s44, %s46
    %p53 = scmp.eq.s32.totalorder %s15, 1
    %p54 = por %p52, %p53
    %p55 = scmp.ne.s32.totalorder %s46, %s47
    %p56 = scmp.eq.s32.totalorder %s15, 0
    %p57 = por %p55, %p56
    %p58 = scmp.ne.s32.totalorder %s46, %s47
    %p59 = scmp.eq.s32.totalorder %s16, 1
    %p60 = por %p58, %p59
    %p62 = scmp.ne.s32.totalorder %s47, %s61
    %p63 = scmp.eq.s32.totalorder %s16, 0
    %p64 = por %p62, %p63
    %s66 = sadd.s32 %s65, 1
    %p69 = scmp.eq.s32.totalorder %s10, 1
    %p70 = scmp.ne.s32.totalorder %s65, %s67
    %p71 = scmp.eq.s32.totalorder %s10, 0
    %p72 = por %p70, %p71
    %p73 = scmp.ne.s32.totalorder %s65, %s67
    %p74 = scmp.eq.s32.totalorder %s15, 1
    %p75 = por %p73, %p74
    %p76 = scmp.ne.s32.totalorder %s67, %s68
    %p77 = scmp.eq.s32.totalorder %s15, 0
    %p78 = por %p76, %p77
    %p79 = scmp.ne.s32.totalorder %s67, %s68
    %p80 = scmp.eq.s32.totalorder %s16, 1
    %p81 = por %p79, %p80
    %p83 = scmp.ne.s32.totalorder %s68, %s82
    %p84 = scmp.eq.s32.totalorder %s16, 0
    %p85 = por %p83, %p84
    %s87 = sadd.s32 %s86, 1
    %p90 = scmp.eq.s32.totalorder %s10, 1
    %p91 = scmp.ne.s32.totalorder %s86, %s88
    %p92 = scmp.eq.s32.totalorder %s10, 0
    %p93 = por %p91, %p92
    %p94 = scmp.ne.s32.totalorder %s86, %s88
    %p95 = scmp.eq.s32.totalorder %s15, 1
    %p96 = por %p94, %p95
    %p97 = scmp.ne.s32.totalorder %s88, %s89
    %p98 = scmp.eq.s32.totalorder %s15, 0
    %p99 = por %p97, %p98
    %p100 = scmp.ne.s32.totalorder %s88, %s89
    %p101 = scmp.eq.s32.totalorder %s16, 1
    %p102 = por %p100, %p101
    %p104 = scmp.ne.s32.totalorder %s89, %s103
    %p105 = scmp.eq.s32.totalorder %s16, 0
    %p106 = por %p104, %p105
    %s107 = ssub.s32 %s10, %s17
    %p108 = scmp.eq.s32.totalorder %s107, 0
    %s110 = sadd.s32 %s109, 1
    %s111 = scalar_select %p108, %s109, %s110
    %p114 = pneg %p108
    %p115 = scmp.eq.s32.totalorder %s10, 1
    %p116 = por %p114, %p115
    %p117 = scmp.ne.s32.totalorder %s109, %s112
    %p118 = scmp.eq.s32.totalorder %s10, 0
    %p119 = por %p117, %p118
    %p120 = scmp.ne.s32.totalorder %s109, %s112
    %p121 = scmp.eq.s32.totalorder %s15, 1
    %p122 = por %p120, %p121
    %p123 = scmp.ne.s32.totalorder %s112, %s113
    %p124 = scmp.eq.s32.totalorder %s15, 0
    %p125 = por %p123, %p124
    %p126 = scmp.ne.s32.totalorder %s112, %s113
    %p127 = scmp.eq.s32.totalorder %s16, 1
    %p128 = por %p126, %p127
    %p130 = scmp.ne.s32.totalorder %s113, %s129
    %p131 = scmp.eq.s32.totalorder %s16, 0
    %p132 = por %p130, %p131
    %p133 = scmp.le.s32.totalorder 1, %s10
    %p134 = scmp.lt.s32.totalorder %s10, 3
    %p135 = pnand %p133, %p134
    %p136 = pneg %p135
    // Predicated region
    $region9: #{net_forward.3} parent=5 // pred_check
      _
    $region10: #{net_forward.3} parent=5 // pred_check_branch
      %138 = sbr.rel (%p135) target = $region12
    $region11: #{net_forward.3} parent=5 // pred_region
      %s139 = ssub.s32 %s10, 1
      // Predicated region
      $region13: #{net_forward.3} parent=11 // pred_check
        %p140 = pneg %p57
      $region14: #{net_forward.3} parent=11 // pred_check_branch
        %142 = sbr.rel (%p140) target = $region16
      $region15: #{net_forward.3} parent=11 // pred_region
        _
      $region16: #{net_forward.3} parent=11 // pred_fallthru
        _
      // Predicated region
      $region17: #{net_forward.3} parent=11 // pred_check
        %p143 = pneg %p78
      $region18: #{net_forward.3} parent=11 // pred_check_branch
        %145 = sbr.rel (%p143) target = $region20
      $region19: #{net_forward.3} parent=11 // pred_region
        _
      $region20: #{net_forward.3} parent=11 // pred_fallthru
        _
      // Predicated region
      $region21: #{net_forward.3} parent=11 // pred_check
        %p146 = pneg %p99
      $region22: #{net_forward.3} parent=11 // pred_check_branch
        %148 = sbr.rel (%p146) target = $region24
      $region23: #{net_forward.3} parent=11 // pred_region
        _
      $region24: #{net_forward.3} parent=11 // pred_fallthru
        _
    $region12: #{net_forward.3} parent=5 // pred_fallthru
      _
    %p149 = scmp.lt.s32.totalorder %s10, 2
    // Predicated region
    $region25: #{net_forward.3} parent=5 // pred_check
      %p150 = pneg %p149
    $region26: #{net_forward.3} parent=5 // pred_check_branch
      %152 = sbr.rel (%p150) target = $region28
    $region27: #{net_forward.3} parent=5 // pred_region
      // Predicated region
      $region29: #{net_forward.3} parent=27 // pred_check
        %p153 = pneg %p30
      $region30: #{net_forward.3} parent=27 // pred_check_branch
        %155 = sbr.rel (%p153) target = $region32
      $region31: #{net_forward.3} parent=27 // pred_region
        %s156 = smul.u32 4, %s10
        %p157 = scmp.lt.s32.totalorder %s156, 7
        %s158 = scalar_select %p157, %s156, 7
        %s159 = smul.addr %s158, 4
        %s160 = smul.addr %s159, 4
        %s161 = scalar_lea.vmem %s0, %s160
        %s162 = smul.u32 4, %s10
      $region32: #{net_forward.3} parent=27 // pred_fallthru
        _
    $region28: #{net_forward.3} parent=5 // pred_fallthru
      _
    %p163 = scmp.le.s32.totalorder 1, %s10
    %p164 = scmp.lt.s32.totalorder %s10, 3
    %p165 = pnand %p163, %p164
    %p166 = pneg %p165
    // Predicated region
    $region33: #{net_forward.3} parent=5 // pred_check
      _
    $region34: #{net_forward.3} parent=5 // pred_check_branch
      %168 = sbr.rel (%p165) target = $region36
    $region35: #{net_forward.3} parent=5 // pred_region
      %s169 = ssub.s32 %s10, 1
      %s170 = smul.u32 4, %s15
      %p171 = scmp.lt.s32.totalorder %s170, 7
      %s172 = scalar_select %p171, %s170, 7
      %s173 = smul.addr %s172, 4
      %s174 = smul.addr %s173, 4
      %s175 = scalar_lea.vmem %s0, %s174
      %p176 = pneg %p36
      %p177 = pneg %p33
      %p178 = pneg %p57
      %p179 = pneg %p54
      %p180 = pneg %p78
      %p181 = pneg %p75
      %p182 = pneg %p99
      %p183 = pneg %p96
      %p184 = pneg %p125
      %p185 = pneg %p122
      %p186 = scmp.lt.s32.totalorder %s15, 1
      %s187 = scalar_select %p186, %s15, 1
      %s188 = smul.addr %s187, 4
      %s189 = smul.addr %s188, 4
      %s190 = scalar_lea.vmem %s4, %s189
      %s191 = smul.u32 4, %s15
      %p192 = scmp.lt.s32.totalorder %s191, 7
      %s193 = scalar_select %p192, %s191, 7
      %s194 = smul.addr %s193, 4
      %s195 = smul.addr %s194, 4
      %s196 = scalar_lea.vmem %s0, %s195
      %s197 = smul.u32 4, %s15
      %p198 = scmp.lt.s32.totalorder %s15, 1
      %s199 = scalar_select %p198, %s15, 1
      %s200 = smul.addr %s199, 4
      %s201 = smul.addr %s200, 4
      %s202 = scalar_lea.vmem %s4, %s201
      %v204 = vld [vmem:[%s1] sm:$0xf]
      %v205 = vld [vmem:[%s1 + $0x4] sm:$0xf]
      %v206 = vld [vmem:[%s2] sm:$0xff]
      %v207 = vld [vmem:[%s2 + $0x8] sm:$0xff]
      %v208 = vld [vmem:[%s3] sm:$0xff]
      %v209 = vld [vmem:[%s3 + $0x8] sm:$0xff]
      %v210 = vld [vmem:[%s196] sm:$0xff]
      %v211 = vld [vmem:[%s196 + $0x8] sm:$0x11]
      %v214 = vunpack.c.l.b16 %v204
      %v215 = vunpack.c.l.b16 %v205
      %v216 = vpack.c.b16 %v215, %v214
      %v219 = vunpack.c.l.b16 %v210
      %v220 = vunpack.c.h.b16 %v210
      %v221 = vunpack.c.l.b16 %v211
      %v222 = vunpack.c.h.b16 %v211
      %v223 = vpack.c.b16 %v221, %v219
      %v224 = vpack.c.b16 %v222, %v220
      %vm225 = vcmask 72704
      %v227 = vsel %vm225, %v216, 0
      %vm229 = vcmask 1043456
      %vm230 = vcmask 1044480
      %v231 = vsel %vm229, 4294967295, 65535
      %v232 = vsel %vm230, %v231, 0
      %v234 = vand.u32 %v223, %v232
      %v237 = vand.u32 %v224, %v232
      %239 = vmatpush.bf16.msra.mxu0 0
      %240 = vmatpush.bf16.msra.mxu0 0
      %241 = vmatpush.bf16.msra.mxu0 0
      %242 = vmatpush.bf16.msra.mxu0 0
      %243 = vmatpush.bf16.msra.mxu0 0
      %244 = vmatpush.bf16.msra.mxu0 0
      %245 = vmatpush.bf16.msra.mxu0 0
      %246 = vmatpush.bf16.msra.mxu0 %v234
      %247 = vmatmul.bf16.gmra.mxu0 %v227
      %v248 = vpop.f32.mrf.mxu0
      %v249 = vadd.f32 0.0, %v248
      %v250 = vpop.f32.mrf.mxu0
      %v251 = vadd.f32 0.0, %v250
      %252 = vdwg.mxu0
      %253 = vmatpush.bf16.msra.mxu0 0
      %254 = vmatpush.bf16.msra.mxu0 0
      %255 = vmatpush.bf16.msra.mxu0 0
      %256 = vmatpush.bf16.msra.mxu0 0
      %257 = vmatpush.bf16.msra.mxu0 0
      %258 = vmatpush.bf16.msra.mxu0 0
      %259 = vmatpush.bf16.msra.mxu0 0
      %260 = vmatpush.bf16.msra.mxu0 %v237
      %261 = vmatmul.bf16.gmra.mxu0 %v227
      %v262 = vpop.f32.mrf.mxu0
      %v263 = vadd.f32 0.0, %v262
      %v264 = vpop.f32.mrf.mxu0
      %v265 = vadd.f32 0.0, %v264
      %266 = vdwg.mxu0
      %268 = vset.pattern.permute.xlu0 0
      %269 = vperm.xlu0 %268, %v206
      %v270 = vpop.permute.xlu0 %269
      %273 = vset.pattern.permute.xlu0 0
      %274 = vperm.xlu0 %273, %v207
      %v275 = vpop.permute.xlu0 %274
      %v277 = vmul.f32 %v249, %v270
      %v278 = vmul.f32 %v263, %v270
      %v279 = vmul.f32 %v251, %v275
      %v280 = vmul.f32 %v265, %v275
      %282 = vset.pattern.permute.xlu0 0
      %283 = vperm.xlu0 %282, %v208
      %v284 = vpop.permute.xlu0 %283
      %287 = vset.pattern.permute.xlu0 0
      %288 = vperm.xlu0 %287, %v209
      %v289 = vpop.permute.xlu0 %288
      %v291 = vadd.f32 %v277, %v284
      %v292 = vadd.f32 %v278, %v284
      %v293 = vadd.f32 %v279, %v289
      %v294 = vadd.f32 %v280, %v289
      %v295 = vtanh.pop %v291
      %v296 = vtanh.pop %v292
      %v297 = vtanh.pop %v293
      %v298 = vtanh.pop %v294
      %s299 = scalar_lea.vmem %s196, 16
      %v300 = vld [vmem:[%s299] sm:$0xff]
      %v301 = vld [vmem:[%s299 + $0x8] sm:$0x11]
      %v304 = vunpack.c.l.b16 %v300
      %v305 = vunpack.c.h.b16 %v300
      %v306 = vunpack.c.l.b16 %v301
      %v307 = vunpack.c.h.b16 %v301
      %v308 = vpack.c.b16 %v306, %v304
      %v309 = vpack.c.b16 %v307, %v305
      %v311 = vand.u32 %v308, %v232
      %v314 = vand.u32 %v309, %v232
      %316 = vmatpush.bf16.msra.mxu0 0
      %317 = vmatpush.bf16.msra.mxu0 0
      %318 = vmatpush.bf16.msra.mxu0 0
      %319 = vmatpush.bf16.msra.mxu0 0
      %320 = vmatpush.bf16.msra.mxu0 0
      %321 = vmatpush.bf16.msra.mxu0 0
      %322 = vmatpush.bf16.msra.mxu0 0
      %323 = vmatpush.bf16.msra.mxu0 %v311
      %324 = vmatmul.bf16.gmra.mxu0 %v227
      %v325 = vpop.f32.mrf.mxu0
      %v326 = vadd.f32 0.0, %v325
      %v327 = vpop.f32.mrf.mxu0
      %v328 = vadd.f32 0.0, %v327
      %329 = vdwg.mxu0
      %330 = vmatpush.bf16.msra.mxu0 0
      %331 = vmatpush.bf16.msra.mxu0 0
      %332 = vmatpush.bf16.msra.mxu0 0
      %333 = vmatpush.bf16.msra.mxu0 0
      %334 = vmatpush.bf16.msra.mxu0 0
      %335 = vmatpush.bf16.msra.mxu0 0
      %336 = vmatpush.bf16.msra.mxu0 0
      %337 = vmatpush.bf16.msra.mxu0 %v314
      %338 = vmatmul.bf16.gmra.mxu0 %v227
      %v339 = vpop.f32.mrf.mxu0
      %v340 = vadd.f32 0.0, %v339
      %v341 = vpop.f32.mrf.mxu0
      %v342 = vadd.f32 0.0, %v341
      %343 = vdwg.mxu0
      %v344 = vmul.f32 %v326, %v270
      %v345 = vmul.f32 %v340, %v270
      %v346 = vmul.f32 %v328, %v275
      %v347 = vmul.f32 %v342, %v275
      %v348 = vadd.f32 %v344, %v284
      %v349 = vadd.f32 %v345, %v284
      %v350 = vadd.f32 %v346, %v289
      %v351 = vadd.f32 %v347, %v289
      %v352 = vtanh.pop %v348
      %v353 = vtanh.pop %v349
      %v354 = vtanh.pop %v350
      %v355 = vtanh.pop %v351
      %v356 = vmax.f32 %v295, %v352
      %v357 = vmax.f32 %v296, %v353
      %v358 = vmax.f32 %v297, %v354
      %v359 = vmax.f32 %v298, %v355
      %s360 = scalar_lea.vmem %s196, 32
      %v361 = vld [vmem:[%s360] sm:$0xff]
      %v362 = vld [vmem:[%s360 + $0x8] sm:$0x11]
      %v365 = vunpack.c.l.b16 %v361
      %v366 = vunpack.c.h.b16 %v361
      %v367 = vunpack.c.l.b16 %v362
      %v368 = vunpack.c.h.b16 %v362
      %v369 = vpack.c.b16 %v367, %v365
      %v370 = vpack.c.b16 %v368, %v366
      %v372 = vand.u32 %v369, %v232
      %v375 = vand.u32 %v370, %v232
      %377 = vmatpush.bf16.msra.mxu0 0
      %378 = vmatpush.bf16.msra.mxu0 0
      %379 = vmatpush.bf16.msra.mxu0 0
      %380 = vmatpush.bf16.msra.mxu0 0
      %381 = vmatpush.bf16.msra.mxu0 0
      %382 = vmatpush.bf16.msra.mxu0 0
      %383 = vmatpush.bf16.msra.mxu0 0
      %384 = vmatpush.bf16.msra.mxu0 %v372
      %385 = vmatmul.bf16.gmra.mxu0 %v227
      %v386 = vpop.f32.mrf.mxu0
      %v387 = vadd.f32 0.0, %v386
      %v388 = vpop.f32.mrf.mxu0
      %v389 = vadd.f32 0.0, %v388
      %390 = vdwg.mxu0
      %391 = vmatpush.bf16.msra.mxu0 0
      %392 = vmatpush.bf16.msra.mxu0 0
      %393 = vmatpush.bf16.msra.mxu0 0
      %394 = vmatpush.bf16.msra.mxu0 0
      %395 = vmatpush.bf16.msra.mxu0 0
      %396 = vmatpush.bf16.msra.mxu0 0
      %397 = vmatpush.bf16.msra.mxu0 0
      %398 = vmatpush.bf16.msra.mxu0 %v375
      %399 = vmatmul.bf16.gmra.mxu0 %v227
      %v400 = vpop.f32.mrf.mxu0
      %v401 = vadd.f32 0.0, %v400
      %v402 = vpop.f32.mrf.mxu0
      %v403 = vadd.f32 0.0, %v402
      %404 = vdwg.mxu0
      %v405 = vmul.f32 %v387, %v270
      %v406 = vmul.f32 %v401, %v270
      %v407 = vmul.f32 %v389, %v275
      %v408 = vmul.f32 %v403, %v275
      %v409 = vadd.f32 %v405, %v284
      %v410 = vadd.f32 %v406, %v284
      %v411 = vadd.f32 %v407, %v289
      %v412 = vadd.f32 %v408, %v289
      %v413 = vtanh.pop %v409
      %v414 = vtanh.pop %v410
      %v415 = vtanh.pop %v411
      %v416 = vtanh.pop %v412
      %v417 = vmax.f32 %v356, %v413
      %v418 = vmax.f32 %v357, %v414
      %v419 = vmax.f32 %v358, %v415
      %v420 = vmax.f32 %v359, %v416
      %s421 = scalar_lea.vmem %s196, 48
      %v422 = vld [vmem:[%s421] sm:$0xff]
      %v423 = vld [vmem:[%s421 + $0x8] sm:$0x11]
      %v426 = vunpack.c.l.b16 %v422
      %v427 = vunpack.c.h.b16 %v422
      %v428 = vunpack.c.l.b16 %v423
      %v429 = vunpack.c.h.b16 %v423
      %v430 = vpack.c.b16 %v428, %v426
      %v431 = vpack.c.b16 %v429, %v427
      %v433 = vand.u32 %v430, %v232
      %v436 = vand.u32 %v431, %v232
      %438 = vmatpush.bf16.msra.mxu0 0
      %439 = vmatpush.bf16.msra.mxu0 0
      %440 = vmatpush.bf16.msra.mxu0 0
      %441 = vmatpush.bf16.msra.mxu0 0
      %442 = vmatpush.bf16.msra.mxu0 0
      %443 = vmatpush.bf16.msra.mxu0 0
      %444 = vmatpush.bf16.msra.mxu0 0
      %445 = vmatpush.bf16.msra.mxu0 %v433
      %446 = vmatmul.bf16.gmra.mxu0 %v227
      %v447 = vpop.f32.mrf.mxu0
      %v448 = vadd.f32 0.0, %v447
      %v449 = vpop.f32.mrf.mxu0
      %v450 = vadd.f32 0.0, %v449
      %451 = vdwg.mxu0
      %452 = vmatpush.bf16.msra.mxu0 0
      %453 = vmatpush.bf16.msra.mxu0 0
      %454 = vmatpush.bf16.msra.mxu0 0
      %455 = vmatpush.bf16.msra.mxu0 0
      %456 = vmatpush.bf16.msra.mxu0 0
      %457 = vmatpush.bf16.msra.mxu0 0
      %458 = vmatpush.bf16.msra.mxu0 0
      %459 = vmatpush.bf16.msra.mxu0 %v436
      %460 = vmatmul.bf16.gmra.mxu0 %v227
      %v461 = vpop.f32.mrf.mxu0
      %v462 = vadd.f32 0.0, %v461
      %v463 = vpop.f32.mrf.mxu0
      %v464 = vadd.f32 0.0, %v463
      %465 = vdwg.mxu0
      %v466 = vmul.f32 %v448, %v270
      %v467 = vmul.f32 %v462, %v270
      %v468 = vmul.f32 %v450, %v275
      %v469 = vmul.f32 %v464, %v275
      %v470 = vadd.f32 %v466, %v284
      %v471 = vadd.f32 %v467, %v284
      %v472 = vadd.f32 %v468, %v289
      %v473 = vadd.f32 %v469, %v289
      %v474 = vtanh.pop %v470
      %v475 = vtanh.pop %v471
      %v476 = vtanh.pop %v472
      %v477 = vtanh.pop %v473
      %v478 = vmax.f32 %v417, %v474
      %v479 = vmax.f32 %v418, %v475
      %v480 = vmax.f32 %v419, %v476
      %v481 = vmax.f32 %v420, %v477
      %vm482 = vcmp.gt.f32.partialorder %v478, 0.0
      %vm483 = vcmp.gt.f32.partialorder %v479, 0.0
      %vm484 = vcmp.gt.f32.partialorder %v480, 0.0
      %vm485 = vcmp.gt.f32.partialorder %v481, 0.0
      %vm486 = vcmp.lt.f32.partialorder %v478, 0.0
      %vm487 = vcmp.lt.f32.partialorder %v479, 0.0
      %vm488 = vcmp.lt.f32.partialorder %v480, 0.0
      %vm489 = vcmp.lt.f32.partialorder %v481, 0.0
      %v490 = vsel %vm486, -1.0, 0.0
      %v491 = vsel %vm487, -1.0, 0.0
      %v492 = vsel %vm488, -1.0, 0.0
      %v493 = vsel %vm489, -1.0, 0.0
      %v494 = vsel %vm482, 1.0, %v490
      %v495 = vsel %vm483, 1.0, %v491
      %v496 = vsel %vm484, 1.0, %v492
      %v497 = vsel %vm485, 1.0, %v493
      %v498 = vpack.c.bf16 %v495, %v494
      %v499 = vpack.c.bf16 %v497, %v496
      %vm500 = vcmask 556036
      %vm501 = vmor %vm500, %vm229
      %502 = vst.msk [vmem:[%s202] sm:$0xff] %vm501, %v498
      %503 = vst.msk [vmem:[%s202 + $0x8] sm:$0xff] %vm501, %v499
      %p504 = scmp.lt.s32.totalorder %s15, 1
      %s505 = scalar_select %p504, %s15, 1
      %s506 = smul.addr %s505, 4
      %s507 = smul.addr %s506, 4
      %s508 = scalar_lea.vmem %s4, %s507
      // Predicated region
      $region37: #{net_forward.3} parent=35 // pred_check
        %p509 = pneg %p122
      $region38: #{net_forward.3} parent=35 // pred_check_branch
        %511 = sbr.rel (%p509) target = $region40
      $region39: #{net_forward.3} parent=35 // pred_region
        _
      $region40: #{net_forward.3} parent=35 // pred_fallthru
        _
    $region36: #{net_forward.3} parent=5 // pred_fallthru
      _
    %p512 = scmp.le.s32.totalorder 2, %s10
    // Predicated region
    $region41: #{net_forward.3} parent=5 // pred_check
      %p513 = pneg %p512
    $region42: #{net_forward.3} parent=5 // pred_check_branch
      %515 = sbr.rel (%p513) target = $region44
    $region43: #{net_forward.3} parent=5 // pred_region
      %s516 = ssub.s32 %s10, 2
      // Predicated region
      $region45: #{net_forward.3} parent=43 // pred_check
        %p517 = pneg %p128
      $region46: #{net_forward.3} parent=43 // pred_check_branch
        %519 = sbr.rel (%p517) target = $region48
      $region47: #{net_forward.3} parent=43 // pred_region
        %p520 = scmp.lt.s32.totalorder %s16, 1
        %s521 = scalar_select %p520, %s16, 1
        %s522 = smul.addr %s521, 4
        %s523 = smul.addr %s522, 4
        %s524 = scalar_lea.vmem %s4, %s523
      $region48: #{net_forward.3} parent=43 // pred_fallthru
        _
    $region44: #{net_forward.3} parent=5 // pred_fallthru
      _
  $region6: #{net_forward.3} parent=0 // loop_footer
    %s14 = sadd.s32 1, %s10
  $region7: #{net_forward.3} parent=0 // loop_footer_branch
    %9 = sbr.rel target = $region3
  $region8: #{net_forward.3} parent=0 // loop_exit
    _

// kernel: net_forward.4
$region0: #{net_forward.4}
  #allocation0 [shape = 'u32[]', space=smem, size = 0x4, offset = 0x4, fixed_abs, tag = 'smem constant byte address 0x4 - core index']
  #allocation1 [shape = 'u32[72,128]{1,0:T(1,128)}', space=vmem, size = 0x9000, scoped, tag = 'internal scratch']
  %s0 = inlined_call_operand.vmem [shape: bf16[8,144,49], index: 0, kind: input, shape index: {}]
  %s1 = inlined_call_operand.vmem [shape: bf16[16,144], index: 1, kind: input, shape index: {}]
  %s2 = inlined_call_operand.vmem [shape: f32[16,1], index: 2, kind: input, shape index: {}]
  %s3 = inlined_call_operand.vmem [shape: f32[16,1], index: 3, kind: input, shape index: {}]
  %s4 = inlined_call_operand.vmem [shape: bf16[2,16,49], index: 4, kind: output, shape index: {}]
  %s5 = sld [smem:[#allocation0]]
  $region49: #{net_forward.4} parent=0
    _
  %s7 = ssub.s32 1, %s5
  %s8 = scalar_select 0, %s7, %s5
  loop: start=0, step=1, limit=4
  $region2: #{net_forward.4} parent=0 // loop_pre_header
    _
  $region3: #{net_forward.4} parent=0 // loop_header
    %s10 = sphi 0, %s14
    %p11 = scmp.ge.s32.totalorder %s10, 4
    %s20 = sphi 0, %s22
    %s23 = sphi 0, %s20
    %s24 = sphi 0, %s23
    %s40 = sphi 0, %s24
    %s44 = sphi 0, %s44
    %s46 = sphi 0, %s44
    %s47 = sphi 0, %s46
    %s61 = sphi 0, %s47
    %s65 = sphi 0, %s65
    %s67 = sphi 0, %s65
    %s68 = sphi 0, %s67
    %s82 = sphi 0, %s68
    %s86 = sphi 0, %s86
    %s88 = sphi 0, %s86
    %s89 = sphi 0, %s88
    %s103 = sphi 0, %s89
    %s109 = sphi 0, %s111
    %s112 = sphi 0, %s109
    %s113 = sphi 0, %s112
    %s129 = sphi 0, %s113
  $region4: #{net_forward.4} parent=0 // loop_header_branch
    %13 = sbr.rel (%p11) target = $region8
  $region5: #{net_forward.4} parent=0 // loop_body
    %s15 = ssub.s32 %s10, 1
    %s16 = ssub.s32 %s10, 2
    %s17 = sadd.s32 %s10, 1
    %s18 = ssub.s32 %s10, %s17
    %p19 = scmp.eq.s32.totalorder %s18, 0
    %s21 = sadd.s32 %s20, 1
    %s22 = scalar_select %p19, %s20, %s21
    %p25 = pneg %p19
    %p26 = scmp.eq.s32.totalorder %s10, 1
    %p27 = por %p25, %p26
    %p28 = scmp.ne.s32.totalorder %s20, %s23
    %p29 = scmp.eq.s32.totalorder %s10, 0
    %p30 = por %p28, %p29
    %p31 = scmp.ne.s32.totalorder %s20, %s23
    %p32 = scmp.eq.s32.totalorder %s15, 1
    %p33 = por %p31, %p32
    %p34 = scmp.ne.s32.totalorder %s23, %s24
    %p35 = scmp.eq.s32.totalorder %s15, 0
    %p36 = por %p34, %p35
    %p37 = scmp.ne.s32.totalorder %s23, %s24
    %p38 = scmp.eq.s32.totalorder %s16, 1
    %p39 = por %p37, %p38
    %p41 = scmp.ne.s32.totalorder %s24, %s40
    %p42 = scmp.eq.s32.totalorder %s16, 0
    %p43 = por %p41, %p42
    %s45 = sadd.s32 %s44, 1
    %p48 = scmp.eq.s32.totalorder %s10, 1
    %p49 = scmp.ne.s32.totalorder %s44, %s46
    %p50 = scmp.eq.s32.totalorder %s10, 0
    %p51 = por %p49, %p50
    %p52 = scmp.ne.s32.totalorder %s44, %s46
    %p53 = scmp.eq.s32.totalorder %s15, 1
    %p54 = por %p52, %p53
    %p55 = scmp.ne.s32.totalorder %s46, %s47
    %p56 = scmp.eq.s32.totalorder %s15, 0
    %p57 = por %p55, %p56
    %p58 = scmp.ne.s32.totalorder %s46, %s47
    %p59 = scmp.eq.s32.totalorder %s16, 1
    %p60 = por %p58, %p59
    %p62 = scmp.ne.s32.totalorder %s47, %s61
    %p63 = scmp.eq.s32.totalorder %s16, 0
    %p64 = por %p62, %p63
    %s66 = sadd.s32 %s65, 1
    %p69 = scmp.eq.s32.totalorder %s10, 1
    %p70 = scmp.ne.s32.totalorder %s65, %s67
    %p71 = scmp.eq.s32.totalorder %s10, 0
    %p72 = por %p70, %p71
    %p73 = scmp.ne.s32.totalorder %s65, %s67
    %p74 = scmp.eq.s32.totalorder %s15, 1
    %p75 = por %p73, %p74
    %p76 = scmp.ne.s32.totalorder %s67, %s68
    %p77 = scmp.eq.s32.totalorder %s15, 0
    %p78 = por %p76, %p77
    %p79 = scmp.ne.s32.totalorder %s67, %s68
    %p80 = scmp.eq.s32.totalorder %s16, 1
    %p81 = por %p79, %p80
    %p83 = scmp.ne.s32.totalorder %s68, %s82
    %p84 = scmp.eq.s32.totalorder %s16, 0
    %p85 = por %p83, %p84
    %s87 = sadd.s32 %s86, 1
    %p90 = scmp.eq.s32.totalorder %s10, 1
    %p91 = scmp.ne.s32.totalorder %s86, %s88
    %p92 = scmp.eq.s32.totalorder %s10, 0
    %p93 = por %p91, %p92
    %p94 = scmp.ne.s32.totalorder %s86, %s88
    %p95 = scmp.eq.s32.totalorder %s15, 1
    %p96 = por %p94, %p95
    %p97 = scmp.ne.s32.totalorder %s88, %s89
    %p98 = scmp.eq.s32.totalorder %s15, 0
    %p99 = por %p97, %p98
    %p100 = scmp.ne.s32.totalorder %s88, %s89
    %p101 = scmp.eq.s32.totalorder %s16, 1
    %p102 = por %p100, %p101
    %p104 = scmp.ne.s32.totalorder %s89, %s103
    %p105 = scmp.eq.s32.totalorder %s16, 0
    %p106 = por %p104, %p105
    %s107 = ssub.s32 %s10, %s17
    %p108 = scmp.eq.s32.totalorder %s107, 0
    %s110 = sadd.s32 %s109, 1
    %s111 = scalar_select %p108, %s109, %s110
    %p114 = pneg %p108
    %p115 = scmp.eq.s32.totalorder %s10, 1
    %p116 = por %p114, %p115
    %p117 = scmp.ne.s32.totalorder %s109, %s112
    %p118 = scmp.eq.s32.totalorder %s10, 0
    %p119 = por %p117, %p118
    %p120 = scmp.ne.s32.totalorder %s109, %s112
    %p121 = scmp.eq.s32.totalorder %s15, 1
    %p122 = por %p120, %p121
    %p123 = scmp.ne.s32.totalorder %s112, %s113
    %p124 = scmp.eq.s32.totalorder %s15, 0
    %p125 = por %p123, %p124
    %p126 = scmp.ne.s32.totalorder %s112, %s113
    %p127 = scmp.eq.s32.totalorder %s16, 1
    %p128 = por %p126, %p127
    %p130 = scmp.ne.s32.totalorder %s113, %s129
    %p131 = scmp.eq.s32.totalorder %s16, 0
    %p132 = por %p130, %p131
    %p133 = scmp.le.s32.totalorder 1, %s10
    %p134 = scmp.lt.s32.totalorder %s10, 3
    %p135 = pnand %p133, %p134
    %p136 = pneg %p135
    // Predicated region
    $region9: #{net_forward.4} parent=5 // pred_check
      _
    $region10: #{net_forward.4} parent=5 // pred_check_branch
      %138 = sbr.rel (%p135) target = $region12
    $region11: #{net_forward.4} parent=5 // pred_region
      %s139 = ssub.s32 %s10, 1
      // Predicated region
      $region13: #{net_forward.4} parent=11 // pred_check
        %p140 = pneg %p57
      $region14: #{net_forward.4} parent=11 // pred_check_branch
        %142 = sbr.rel (%p140) target = $region16
      $region15: #{net_forward.4} parent=11 // pred_region
        _
      $region16: #{net_forward.4} parent=11 // pred_fallthru
        _
      // Predicated region
      $region17: #{net_forward.4} parent=11 // pred_check
        %p143 = pneg %p78
      $region18: #{net_forward.4} parent=11 // pred_check_branch
        %145 = sbr.rel (%p143) target = $region20
      $region19: #{net_forward.4} parent=11 // pred_region
        _
      $region20: #{net_forward.4} parent=11 // pred_fallthru
        _
      // Predicated region
      $region21: #{net_forward.4} parent=11 // pred_check
        %p146 = pneg %p99
      $region22: #{net_forward.4} parent=11 // pred_check_branch
        %148 = sbr.rel (%p146) target = $region24
      $region23: #{net_forward.4} parent=11 // pred_region
        _
      $region24: #{net_forward.4} parent=11 // pred_fallthru
        _
    $region12: #{net_forward.4} parent=5 // pred_fallthru
      _
    %p149 = scmp.lt.s32.totalorder %s10, 2
    // Predicated region
    $region25: #{net_forward.4} parent=5 // pred_check
      %p150 = pneg %p149
    $region26: #{net_forward.4} parent=5 // pred_check_branch
      %152 = sbr.rel (%p150) target = $region28
    $region27: #{net_forward.4} parent=5 // pred_region
      // Predicated region
      $region29: #{net_forward.4} parent=27 // pred_check
        %p153 = pneg %p30
      $region30: #{net_forward.4} parent=27 // pred_check_branch
        %155 = sbr.rel (%p153) target = $region32
      $region31: #{net_forward.4} parent=27 // pred_region
        %s156 = smul.u32 4, %s10
        %p157 = scmp.lt.s32.totalorder %s156, 7
        %s158 = scalar_select %p157, %s156, 7
        %s159 = smul.addr %s158, 18
        %s160 = smul.addr %s159, 4
        %s161 = scalar_lea.vmem %s0, %s160
        %s162 = smul.u32 4, %s10
      $region32: #{net_forward.4} parent=27 // pred_fallthru
        _
    $region28: #{net_forward.4} parent=5 // pred_fallthru
      _
    %p163 = scmp.le.s32.totalorder 1, %s10
    %p164 = scmp.lt.s32.totalorder %s10, 3
    %p165 = pnand %p163, %p164
    %p166 = pneg %p165
    // Predicated region
    $region33: #{net_forward.4} parent=5 // pred_check
      _
    $region34: #{net_forward.4} parent=5 // pred_check_branch
      %168 = sbr.rel (%p165) target = $region36
    $region35: #{net_forward.4} parent=5 // pred_region
      %s169 = ssub.s32 %s10, 1
      %s170 = smul.u32 4, %s15
      %p171 = scmp.lt.s32.totalorder %s170, 7
      %s172 = scalar_select %p171, %s170, 7
      %s173 = smul.addr %s172, 18
      %s174 = smul.addr %s173, 4
      %s175 = scalar_lea.vmem %s0, %s174
      %p176 = pneg %p36
      %p177 = pneg %p33
      %p178 = pneg %p57
      %p179 = pneg %p54
      %p180 = pneg %p78
      %p181 = pneg %p75
      %p182 = pneg %p99
      %p183 = pneg %p96
      %p184 = pneg %p125
      %p185 = pneg %p122
      %p186 = scmp.lt.s32.totalorder %s15, 1
      %s187 = scalar_select %p186, %s15, 1
      %s188 = smul.addr %s187, 2
      %s189 = smul.addr %s188, 4
      %s190 = scalar_lea.vmem %s4, %s189
      %s191 = smul.u32 4, %s15
      %p192 = scmp.lt.s32.totalorder %s191, 7
      %s193 = scalar_select %p192, %s191, 7
      %s194 = smul.addr %s193, 18
      %s195 = smul.addr %s194, 4
      %s196 = scalar_lea.vmem %s0, %s195
      %s197 = smul.u32 4, %s15
      %p198 = scmp.lt.s32.totalorder %s15, 1
      %s199 = scalar_select %p198, %s15, 1
      %s200 = smul.addr %s199, 2
      %s201 = smul.addr %s200, 4
      %s202 = scalar_lea.vmem %s4, %s201
      %v204 = vld [vmem:[%s1] sm:$0xff]
      %v205 = vld [vmem:[%s1 + $0x8] sm:$0xff]
      %v206 = vld [vmem:[%s2] sm:$0xff]
      %v207 = vld [vmem:[%s2 + $0x8] sm:$0xff]
      %v208 = vld [vmem:[%s3] sm:$0xff]
      %v209 = vld [vmem:[%s3 + $0x8] sm:$0xff]
      %v210 = vld [vmem:[%s196] sm:$0xf]
      %v211 = vld [vmem:[%s196 + $0x4] sm:$0xf]
      %v212 = vld [vmem:[%s196 + $0x8] sm:$0xf]
      %v213 = vld [vmem:[%s196 + $0xc] sm:$0xf]
      %v214 = vld [vmem:[%s196 + $0x10] sm:$0xf]
      %v215 = vld [vmem:[%s196 + $0x14] sm:$0xf]
      %v216 = vld [vmem:[%s196 + $0x18] sm:$0xf]
      %v217 = vld [vmem:[%s196 + $0x1c] sm:$0xf]
      %v218 = vld [vmem:[%s196 + $0x20] sm:$0xf]
      %v219 = vld [vmem:[%s196 + $0x24] sm:$0xf]
      %v220 = vld [vmem:[%s196 + $0x28] sm:$0xf]
      %v221 = vld [vmem:[%s196 + $0x2c] sm:$0xf]
      %v222 = vld [vmem:[%s196 + $0x30] sm:$0xf]
      %v223 = vld [vmem:[%s196 + $0x34] sm:$0xf]
      %v224 = vld [vmem:[%s196 + $0x38] sm:$0xf]
      %v225 = vld [vmem:[%s196 + $0x3c] sm:$0xf]
      %v226 = vld [vmem:[%s196 + $0x40] sm:$0xf]
      %v227 = vld [vmem:[%s196 + $0x44] sm:$0xf]
      %v230 = vunpack.c.l.b16 %v204
      %v231 = vunpack.c.h.b16 %v204
      %v232 = vunpack.c.l.b16 %v205
      %v233 = vunpack.c.h.b16 %v205
      %v234 = vpack.c.b16 %v232, %v230
      %v235 = vpack.c.b16 %v233, %v231
      %v255 = vunpack.c.l.b16 %v210
      %v256 = vunpack.c.l.b16 %v211
      %v257 = vunpack.c.l.b16 %v212
      %v258 = vunpack.c.l.b16 %v213
      %v259 = vunpack.c.l.b16 %v214
      %v260 = vunpack.c.l.b16 %v215
      %v261 = vunpack.c.l.b16 %v216
      %v262 = vunpack.c.l.b16 %v217
      %v263 = vunpack.c.l.b16 %v218
      %v264 = vunpack.c.l.b16 %v219
      %v265 = vunpack.c.l.b16 %v220
      %v266 = vunpack.c.l.b16 %v221
      %v267 = vunpack.c.l.b16 %v222
      %v268 = vunpack.c.l.b16 %v223
      %v269 = vunpack.c.l.b16 %v224
      %v270 = vunpack.c.l.b16 %v225
      %v271 = vunpack.c.l.b16 %v226
      %v272 = vunpack.c.l.b16 %v227
      %v273 = vpack.c.b16 %v256, %v255
      %v274 = vpack.c.b16 %v258, %v257
      %v275 = vpack.c.b16 %v260, %v259
      %v276 = vpack.c.b16 %v262, %v261
      %v277 = vpack.c.b16 %v264, %v263
      %v278 = vpack.c.b16 %v266, %v265
      %v279 = vpack.c.b16 %v268, %v267
      %v280 = vpack.c.b16 %v270, %v269
      %v281 = vpack.c.b16 %v272, %v271
      %vm291 = vcmask 130048
      %v293 = vsel %vm291, %v235, 0
      %295 = vmatpush.bf16.msra.mxu0 %v280
      %296 = vmatpush.bf16.msra.mxu0 %v279
      %297 = vmatpush.bf16.msra.mxu0 %v278
      %298 = vmatpush.bf16.msra.mxu0 %v277
      %299 = vmatpush.bf16.msra.mxu0 %v276
      %300 = vmatpush.bf16.msra.mxu0 %v275
      %301 = vmatpush.bf16.msra.mxu0 %v274
      %302 = vmatpush.bf16.msra.mxu0 %v273
      %303 = vmatmul.bf16.gmra.mxu0 %v234
      %v304 = vpop.f32.mrf.mxu0
      %v305 = vadd.f32 0.0, %v304
      %v306 = vpop.f32.mrf.mxu0
      %v307 = vadd.f32 0.0, %v306
      %308 = vdwg.mxu0
      %309 = vmatpush.bf16.msra.mxu0 0
      %310 = vmatpush.bf16.msra.mxu0 0
      %311 = vmatpush.bf16.msra.mxu0 0
      %312 = vmatpush.bf16.msra.mxu0 0
      %313 = vmatpush.bf16.msra.mxu0 0
      %314 = vmatpush.bf16.msra.mxu0 0
      %315 = vmatpush.bf16.msra.mxu0 0
      %316 = vmatpush.bf16.msra.mxu0 %v281
      %317 = vmatmul.bf16.gmra.mxu0 %v293
      %v318 = vpop.f32.mrf.mxu0
      %v319 = vadd.f32 %v305, %v318
      %v320 = vpop.f32.mrf.mxu0
      %v321 = vadd.f32 %v307, %v320
      %322 = vdwg.mxu0
      %324 = vset.pattern.permute.xlu0 0
      %325 = vperm.xlu0 %324, %v206
      %v326 = vpop.permute.xlu0 %325
      %329 = vset.pattern.permute.xlu0 0
      %330 = vperm.xlu0 %329, %v207
      %v331 = vpop.permute.xlu0 %330
      %v333 = vmul.f32 %v319, %v326
      %v334 = vmul.f32 %v321, %v331
      %336 = vset.pattern.permute.xlu0 0
      %337 = vperm.xlu0 %336, %v208
      %v338 = vpop.permute.xlu0 %337
      %341 = vset.pattern.permute.xlu0 0
      %342 = vperm.xlu0 %341, %v209
      %v343 = vpop.permute.xlu0 %342
      %v345 = vadd.f32 %v333, %v338
      %v346 = vadd.f32 %v334, %v343
      %v347 = vtanh.pop %v345
      %v348 = vtanh.pop %v346
      %s349 = scalar_lea.vmem %s196, 72
      %v350 = vld [vmem:[%s349] sm:$0xf]
      %v351 = vld [vmem:[%s349 + $0x4] sm:$0xf]
      %v352 = vld [vmem:[%s349 + $0x8] sm:$0xf]
      %v353 = vld [vmem:[%s349 + $0xc] sm:$0xf]
      %v354 = vld [vmem:[%s349 + $0x10] sm:$0xf]
      %v355 = vld [vmem:[%s349 + $0x14] sm:$0xf]
      %v356 = vld [vmem:[%s349 + $0x18] sm:$0xf]
      %v357 = vld [vmem:[%s349 + $0x1c] sm:$0xf]
      %v358 = vld [vmem:[%s349 + $0x20] sm:$0xf]
      %v359 = vld [vmem:[%s349 + $0x24] sm:$0xf]
      %v360 = vld [vmem:[%s349 + $0x28] sm:$0xf]
      %v361 = vld [vmem:[%s349 + $0x2c] sm:$0xf]
      %v362 = vld [vmem:[%s349 + $0x30] sm:$0xf]
      %v363 = vld [vmem:[%s349 + $0x34] sm:$0xf]
      %v364 = vld [vmem:[%s349 + $0x38] sm:$0xf]
      %v365 = vld [vmem:[%s349 + $0x3c] sm:$0xf]
      %v366 = vld [vmem:[%s349 + $0x40] sm:$0xf]
      %v367 = vld [vmem:[%s349 + $0x44] sm:$0xf]
      %v386 = vunpack.c.l.b16 %v350
      %v387 = vunpack.c.l.b16 %v351
      %v388 = vunpack.c.l.b16 %v352
      %v389 = vunpack.c.l.b16 %v353
      %v390 = vunpack.c.l.b16 %v354
      %v391 = vunpack.c.l.b16 %v355
      %v392 = vunpack.c.l.b16 %v356
      %v393 = vunpack.c.l.b16 %v357
      %v394 = vunpack.c.l.b16 %v358
      %v395 = vunpack.c.l.b16 %v359
      %v396 = vunpack.c.l.b16 %v360
      %v397 = vunpack.c.l.b16 %v361
      %v398 = vunpack.c.l.b16 %v362
      %v399 = vunpack.c.l.b16 %v363
      %v400 = vunpack.c.l.b16 %v364
      %v401 = vunpack.c.l.b16 %v365
      %v402 = vunpack.c.l.b16 %v366
      %v403 = vunpack.c.l.b16 %v367
      %v404 = vpack.c.b16 %v387, %v386
      %v405 = vpack.c.b16 %v389, %v388
      %v406 = vpack.c.b16 %v391, %v390
      %v407 = vpack.c.b16 %v393, %v392
      %v408 = vpack.c.b16 %v395, %v394
      %v409 = vpack.c.b16 %v397, %v396
      %v410 = vpack.c.b16 %v399, %v398
      %v411 = vpack.c.b16 %v401, %v400
      %v412 = vpack.c.b16 %v403, %v402
      %422 = vmatpush.bf16.msra.mxu0 %v411
      %423 = vmatpush.bf16.msra.mxu0 %v410
      %424 = vmatpush.bf16.msra.mxu0 %v409
      %425 = vmatpush.bf16.msra.mxu0 %v408
      %426 = vmatpush.bf16.msra.mxu0 %v407
      %427 = vmatpush.bf16.msra.mxu0 %v406
      %428 = vmatpush.bf16.msra.mxu0 %v405
      %429 = vmatpush.bf16.msra.mxu0 %v404
      %430 = vmatmul.bf16.gmra.mxu0 %v234
      %v431 = vpop.f32.mrf.mxu0
      %v432 = vadd.f32 0.0, %v431
      %v433 = vpop.f32.mrf.mxu0
      %v434 = vadd.f32 0.0, %v433
      %435 = vdwg.mxu0
      %436 = vmatpush.bf16.msra.mxu0 0
      %437 = vmatpush.bf16.msra.mxu0 0
      %438 = vmatpush.bf16.msra.mxu0 0
      %439 = vmatpush.bf16.msra.mxu0 0
      %440 = vmatpush.bf16.msra.mxu0 0
      %441 = vmatpush.bf16.msra.mxu0 0
      %442 = vmatpush.bf16.msra.mxu0 0
      %443 = vmatpush.bf16.msra.mxu0 %v412
      %444 = vmatmul.bf16.gmra.mxu0 %v293
      %v445 = vpop.f32.mrf.mxu0
      %v446 = vadd.f32 %v432, %v445
      %v447 = vpop.f32.mrf.mxu0
      %v448 = vadd.f32 %v434, %v447
      %449 = vdwg.mxu0
      %v450 = vmul.f32 %v446, %v326
      %v451 = vmul.f32 %v448, %v331
      %v452 = vadd.f32 %v450, %v338
      %v453 = vadd.f32 %v451, %v343
      %v454 = vtanh.pop %v452
      %v455 = vtanh.pop %v453
      %v456 = vmax.f32 %v347, %v454
      %v457 = vmax.f32 %v348, %v455
      %s458 = scalar_lea.vmem %s196, 144
      %v459 = vld [vmem:[%s458] sm:$0xf]
      %v460 = vld [vmem:[%s458 + $0x4] sm:$0xf]
      %v461 = vld [vmem:[%s458 + $0x8] sm:$0xf]
      %v462 = vld [vmem:[%s458 + $0xc] sm:$0xf]
      %v463 = vld [vmem:[%s458 + $0x10] sm:$0xf]
      %v464 = vld [vmem:[%s458 + $0x14] sm:$0xf]
      %v465 = vld [vmem:[%s458 + $0x18] sm:$0xf]
      %v466 = vld [vmem:[%s458 + $0x1c] sm:$0xf]
      %v467 = vld [vmem:[%s458 + $0x20] sm:$0xf]
      %v468 = vld [vmem:[%s458 + $0x24] sm:$0xf]
      %v469 = vld [vmem:[%s458 + $0x28] sm:$0xf]
      %v470 = vld [vmem:[%s458 + $0x2c] sm:$0xf]
      %v471 = vld [vmem:[%s458 + $0x30] sm:$0xf]
      %v472 = vld [vmem:[%s458 + $0x34] sm:$0xf]
      %v473 = vld [vmem:[%s458 + $0x38] sm:$0xf]
      %v474 = vld [vmem:[%s458 + $0x3c] sm:$0xf]
      %v475 = vld [vmem:[%s458 + $0x40] sm:$0xf]
      %v476 = vld [vmem:[%s458 + $0x44] sm:$0xf]
      %v495 = vunpack.c.l.b16 %v459
      %v496 = vunpack.c.l.b16 %v460
      %v497 = vunpack.c.l.b16 %v461
      %v498 = vunpack.c.l.b16 %v462
      %v499 = vunpack.c.l.b16 %v463
      %v500 = vunpack.c.l.b16 %v464
      %v501 = vunpack.c.l.b16 %v465
      %v502 = vunpack.c.l.b16 %v466
      %v503 = vunpack.c.l.b16 %v467
      %v504 = vunpack.c.l.b16 %v468
      %v505 = vunpack.c.l.b16 %v469
      %v506 = vunpack.c.l.b16 %v470
      %v507 = vunpack.c.l.b16 %v471
      %v508 = vunpack.c.l.b16 %v472
      %v509 = vunpack.c.l.b16 %v473
      %v510 = vunpack.c.l.b16 %v474
      %v511 = vunpack.c.l.b16 %v475
      %v512 = vunpack.c.l.b16 %v476
      %v513 = vpack.c.b16 %v496, %v495
      %v514 = vpack.c.b16 %v498, %v497
      %v515 = vpack.c.b16 %v500, %v499
      %v516 = vpack.c.b16 %v502, %v501
      %v517 = vpack.c.b16 %v504, %v503
      %v518 = vpack.c.b16 %v506, %v505
      %v519 = vpack.c.b16 %v508, %v507
      %v520 = vpack.c.b16 %v510, %v509
      %v521 = vpack.c.b16 %v512, %v511
      %531 = vmatpush.bf16.msra.mxu0 %v520
      %532 = vmatpush.bf16.msra.mxu0 %v519
      %533 = vmatpush.bf16.msra.mxu0 %v518
      %534 = vmatpush.bf16.msra.mxu0 %v517
      %535 = vmatpush.bf16.msra.mxu0 %v516
      %536 = vmatpush.bf16.msra.mxu0 %v515
      %537 = vmatpush.bf16.msra.mxu0 %v514
      %538 = vmatpush.bf16.msra.mxu0 %v513
      %539 = vmatmul.bf16.gmra.mxu0 %v234
      %v540 = vpop.f32.mrf.mxu0
      %v541 = vadd.f32 0.0, %v540
      %v542 = vpop.f32.mrf.mxu0
      %v543 = vadd.f32 0.0, %v542
      %544 = vdwg.mxu0
      %545 = vmatpush.bf16.msra.mxu0 0
      %546 = vmatpush.bf16.msra.mxu0 0
      %547 = vmatpush.bf16.msra.mxu0 0
      %548 = vmatpush.bf16.msra.mxu0 0
      %549 = vmatpush.bf16.msra.mxu0 0
      %550 = vmatpush.bf16.msra.mxu0 0
      %551 = vmatpush.bf16.msra.mxu0 0
      %552 = vmatpush.bf16.msra.mxu0 %v521
      %553 = vmatmul.bf16.gmra.mxu0 %v293
      %v554 = vpop.f32.mrf.mxu0
      %v555 = vadd.f32 %v541, %v554
      %v556 = vpop.f32.mrf.mxu0
      %v557 = vadd.f32 %v543, %v556
      %558 = vdwg.mxu0
      %v559 = vmul.f32 %v555, %v326
      %v560 = vmul.f32 %v557, %v331
      %v561 = vadd.f32 %v559, %v338
      %v562 = vadd.f32 %v560, %v343
      %v563 = vtanh.pop %v561
      %v564 = vtanh.pop %v562
      %v565 = vmax.f32 %v456, %v563
      %v566 = vmax.f32 %v457, %v564
      %s567 = scalar_lea.vmem %s196, 216
      %v568 = vld [vmem:[%s567] sm:$0xf]
      %v569 = vld [vmem:[%s567 + $0x4] sm:$0xf]
      %v570 = vld [vmem:[%s567 + $0x8] sm:$0xf]
      %v571 = vld [vmem:[%s567 + $0xc] sm:$0xf]
      %v572 = vld [vmem:[%s567 + $0x10] sm:$0xf]
      %v573 = vld [vmem:[%s567 + $0x14] sm:$0xf]
      %v574 = vld [vmem:[%s567 + $0x18] sm:$0xf]
      %v575 = vld [vmem:[%s567 + $0x1c] sm:$0xf]
      %v576 = vld [vmem:[%s567 + $0x20] sm:$0xf]
      %v577 = vld [vmem:[%s567 + $0x24] sm:$0xf]
      %v578 = vld [vmem:[%s567 + $0x28] sm:$0xf]
      %v579 = vld [vmem:[%s567 + $0x2c] sm:$0xf]
      %v580 = vld [vmem:[%s567 + $0x30] sm:$0xf]
      %v581 = vld [vmem:[%s567 + $0x34] sm:$0xf]
      %v582 = vld [vmem:[%s567 + $0x38] sm:$0xf]
      %v583 = vld [vmem:[%s567 + $0x3c] sm:$0xf]
      %v584 = vld [vmem:[%s567 + $0x40] sm:$0xf]
      %v585 = vld [vmem:[%s567 + $0x44] sm:$0xf]
      %v604 = vunpack.c.l.b16 %v568
      %v605 = vunpack.c.l.b16 %v569
      %v606 = vunpack.c.l.b16 %v570
      %v607 = vunpack.c.l.b16 %v571
      %v608 = vunpack.c.l.b16 %v572
      %v609 = vunpack.c.l.b16 %v573
      %v610 = vunpack.c.l.b16 %v574
      %v611 = vunpack.c.l.b16 %v575
      %v612 = vunpack.c.l.b16 %v576
      %v613 = vunpack.c.l.b16 %v577
      %v614 = vunpack.c.l.b16 %v578
      %v615 = vunpack.c.l.b16 %v579
      %v616 = vunpack.c.l.b16 %v580
      %v617 = vunpack.c.l.b16 %v581
      %v618 = vunpack.c.l.b16 %v582
      %v619 = vunpack.c.l.b16 %v583
      %v620 = vunpack.c.l.b16 %v584
      %v621 = vunpack.c.l.b16 %v585
      %v622 = vpack.c.b16 %v605, %v604
      %v623 = vpack.c.b16 %v607, %v606
      %v624 = vpack.c.b16 %v609, %v608
      %v625 = vpack.c.b16 %v611, %v610
      %v626 = vpack.c.b16 %v613, %v612
      %v627 = vpack.c.b16 %v615, %v614
      %v628 = vpack.c.b16 %v617, %v616
      %v629 = vpack.c.b16 %v619, %v618
      %v630 = vpack.c.b16 %v621, %v620
      %640 = vmatpush.bf16.msra.mxu0 %v629
      %641 = vmatpush.bf16.msra.mxu0 %v628
      %642 = vmatpush.bf16.msra.mxu0 %v627
      %643 = vmatpush.bf16.msra.mxu0 %v626
      %644 = vmatpush.bf16.msra.mxu0 %v625
      %645 = vmatpush.bf16.msra.mxu0 %v624
      %646 = vmatpush.bf16.msra.mxu0 %v623
      %647 = vmatpush.bf16.msra.mxu0 %v622
      %648 = vmatmul.bf16.gmra.mxu0 %v234
      %v649 = vpop.f32.mrf.mxu0
      %v650 = vadd.f32 0.0, %v649
      %v651 = vpop.f32.mrf.mxu0
      %v652 = vadd.f32 0.0, %v651
      %653 = vdwg.mxu0
      %654 = vmatpush.bf16.msra.mxu0 0
      %655 = vmatpush.bf16.msra.mxu0 0
      %656 = vmatpush.bf16.msra.mxu0 0
      %657 = vmatpush.bf16.msra.mxu0 0
      %658 = vmatpush.bf16.msra.mxu0 0
      %659 = vmatpush.bf16.msra.mxu0 0
      %660 = vmatpush.bf16.msra.mxu0 0
      %661 = vmatpush.bf16.msra.mxu0 %v630
      %662 = vmatmul.bf16.gmra.mxu0 %v293
      %v663 = vpop.f32.mrf.mxu0
      %v664 = vadd.f32 %v650, %v663
      %v665 = vpop.f32.mrf.mxu0
      %v666 = vadd.f32 %v652, %v665
      %667 = vdwg.mxu0
      %v668 = vmul.f32 %v664, %v326
      %v669 = vmul.f32 %v666, %v331
      %v670 = vadd.f32 %v668, %v338
      %v671 = vadd.f32 %v669, %v343
      %v672 = vtanh.pop %v670
      %v673 = vtanh.pop %v671
      %v674 = vmax.f32 %v565, %v672
      %v675 = vmax.f32 %v566, %v673
      %v676 = vpack.c.bf16 %v674, %v674
      %v677 = vpack.c.bf16 %v675, %v675
      %vm678 = vcmask 396288
      %679 = vst.msk [vmem:[%s202] sm:$0xf] %vm678, %v676
      %680 = vst.msk [vmem:[%s202 + $0x4] sm:$0xf] %vm678, %v677
      %p681 = scmp.lt.s32.totalorder %s15, 1
      %s682 = scalar_select %p681, %s15, 1
      %s683 = smul.addr %s682, 2
      %s684 = smul.addr %s683, 4
      %s685 = scalar_lea.vmem %s4, %s684
      // Predicated region
      $region37: #{net_forward.4} parent=35 // pred_check
        %p686 = pneg %p122
      $region38: #{net_forward.4} parent=35 // pred_check_branch
        %688 = sbr.rel (%p686) target = $region40
      $region39: #{net_forward.4} parent=35 // pred_region
        _
      $region40: #{net_forward.4} parent=35 // pred_fallthru
        _
    $region36: #{net_forward.4} parent=5 // pred_fallthru
      _
    %p689 = scmp.le.s32.totalorder 2, %s10
    // Predicated region
    $region41: #{net_forward.4} parent=5 // pred_check
      %p690 = pneg %p689
    $region42: #{net_forward.4} parent=5 // pred_check_branch
      %692 = sbr.rel (%p690) target = $region44
    $region43: #{net_forward.4} parent=5 // pred_region
      %s693 = ssub.s32 %s10, 2
      // Predicated region
      $region45: #{net_forward.4} parent=43 // pred_check
        %p694 = pneg %p128
      $region46: #{net_forward.4} parent=43 // pred_check_branch
        %696 = sbr.rel (%p694) target = $region48
      $region47: #{net_forward.4} parent=43 // pred_region
        %p697 = scmp.lt.s32.totalorder %s16, 1
        %s698 = scalar_select %p697, %s16, 1
        %s699 = smul.addr %s698, 2
        %s700 = smul.addr %s699, 4
        %s701 = scalar_lea.vmem %s4, %s700
      $region48: #{net_forward.4} parent=43 // pred_fallthru
        _
    $region44: #{net_forward.4} parent=5 // pred_fallthru
      _
  $region6: #{net_forward.4} parent=0 // loop_footer
    %s14 = sadd.s32 1, %s10
  $region7: #{net_forward.4} parent=0 // loop_footer_branch
    %9 = sbr.rel target = $region3
  $region8: #{net_forward.4} parent=0 // loop_exit
    _

// kernel: net_forward.5
$region0: #{net_forward.5}
  #allocation0 [shape = 'u32[]', space=smem, size = 0x4, offset = 0x4, fixed_abs, tag = 'smem constant byte address 0x4 - core index']
  #allocation1 [shape = 'u32[72,128]{1,0:T(1,128)}', space=vmem, size = 0x9000, scoped, tag = 'internal scratch']
  %s0 = inlined_call_operand.vmem [shape: bf16[2,784], index: 0, kind: input, shape index: {}]
  %s1 = inlined_call_operand.vmem [shape: bf16[784,128], index: 1, kind: input, shape index: {}]
  %s2 = inlined_call_operand.vmem [shape: f32[1,128], index: 2, kind: input, shape index: {}]
  %s3 = inlined_call_operand.vmem [shape: f32[1,128], index: 3, kind: input, shape index: {}]
  %s4 = inlined_call_operand.vmem [shape: bf16[128,128], index: 4, kind: input, shape index: {}]
  %s5 = inlined_call_operand.vmem [shape: f32[1,128], index: 5, kind: input, shape index: {}]
  %s6 = inlined_call_operand.vmem [shape: f32[1,128], index: 6, kind: input, shape index: {}]
  %s7 = inlined_call_operand.hbm [shape: f32[2,128], index: 7, kind: output, shape index: {}]
  %s8 = sld [smem:[#allocation0]]
  $region38: #{net_forward.5} parent=0
    _
  %s10 = ssub.s32 1, %s8
  %s11 = scalar_select 0, %s10, %s8
  $region1: #{net_forward.5} parent=0
    #allocation2 [shape = 'u8[1024]{0}', space=vmem, size = 0x400, scoped, tag = 'output window, operand 0, single buffered']
    #allocation3 [shape = 's32[1]{0}', space=sflag, size = 0x4, scoped, tag = 'scoped memory for net_forward.5']
    %12 = vsyncpa [#allocation3], 0
    // Predicated region
    $region2: #{net_forward.5} parent=1 // pred_check
      _
    $region3: #{net_forward.5} parent=1 // pred_check_branch
      %14 = sbr.rel (0) target = $region5
    $region4: #{net_forward.5} parent=1 // pred_region
      _
    $region5: #{net_forward.5} parent=1 // pred_fallthru
      _
    // Predicated region
    $region6: #{net_forward.5} parent=1 // pred_check
      _
    $region7: #{net_forward.5} parent=1 // pred_check_branch
      %16 = sbr.rel (0) target = $region9
    $region8: #{net_forward.5} parent=1 // pred_region
      _
    $region9: #{net_forward.5} parent=1 // pred_fallthru
      _
    // Predicated region
    $region10: #{net_forward.5} parent=1 // pred_check
      _
    $region11: #{net_forward.5} parent=1 // pred_check_branch
      %18 = sbr.rel (0) target = $region13
    $region12: #{net_forward.5} parent=1 // pred_region
      _
    $region13: #{net_forward.5} parent=1 // pred_fallthru
      _
    // Predicated region
    $region14: #{net_forward.5} parent=1 // pred_check
      _
    $region15: #{net_forward.5} parent=1 // pred_check_branch
      %20 = sbr.rel (0) target = $region17
    $region16: #{net_forward.5} parent=1 // pred_region
      _
    $region17: #{net_forward.5} parent=1 // pred_fallthru
      _
    // Predicated region
    $region18: #{net_forward.5} parent=1 // pred_check
      _
    $region19: #{net_forward.5} parent=1 // pred_check_branch
      %22 = sbr.rel (0) target = $region21
    $region20: #{net_forward.5} parent=1 // pred_region
      _
    $region21: #{net_forward.5} parent=1 // pred_fallthru
      _
    // Predicated region
    $region22: #{net_forward.5} parent=1 // pred_check
      _
    $region23: #{net_forward.5} parent=1 // pred_check_branch
      %24 = sbr.rel (0) target = $region25
    $region24: #{net_forward.5} parent=1 // pred_region
      _
    $region25: #{net_forward.5} parent=1 // pred_fallthru
      _
    // Predicated region
    $region26: #{net_forward.5} parent=1 // pred_check
      _
    $region27: #{net_forward.5} parent=1 // pred_check_branch
      %26 = sbr.rel (0) target = $region29
    $region28: #{net_forward.5} parent=1 // pred_region
      _
    $region29: #{net_forward.5} parent=1 // pred_fallthru
      _
    %v28 = vld [vmem:[%s0] sm:$0x7f]
    %v29 = vld [vmem:[%s1] sm:$0xf]
    %v30 = vld [vmem:[%s1 + $0x4] sm:$0xf]
    %v31 = vld [vmem:[%s1 + $0x8] sm:$0xf]
    %v32 = vld [vmem:[%s1 + $0xc] sm:$0xf]
    %v33 = vld [vmem:[%s1 + $0x10] sm:$0xf]
    %v34 = vld [vmem:[%s1 + $0x14] sm:$0xf]
    %v35 = vld [vmem:[%s1 + $0x18] sm:$0xf]
    %v36 = vld [vmem:[%s1 + $0x1c] sm:$0xf]
    %v37 = vld [vmem:[%s1 + $0x20] sm:$0xf]
    %v38 = vld [vmem:[%s1 + $0x24] sm:$0xf]
    %v39 = vld [vmem:[%s1 + $0x28] sm:$0xf]
    %v40 = vld [vmem:[%s1 + $0x2c] sm:$0xf]
    %v41 = vld [vmem:[%s1 + $0x30] sm:$0xf]
    %v42 = vld [vmem:[%s1 + $0x34] sm:$0xf]
    %v43 = vld [vmem:[%s1 + $0x38] sm:$0xf]
    %v44 = vld [vmem:[%s1 + $0x3c] sm:$0xf]
    %v45 = vld [vmem:[%s1 + $0x40] sm:$0xf]
    %v46 = vld [vmem:[%s1 + $0x44] sm:$0xf]
    %v47 = vld [vmem:[%s1 + $0x48] sm:$0xf]
    %v48 = vld [vmem:[%s1 + $0x4c] sm:$0xf]
    %v49 = vld [vmem:[%s1 + $0x50] sm:$0xf]
    %v50 = vld [vmem:[%s1 + $0x54] sm:$0xf]
    %v51 = vld [vmem:[%s1 + $0x58] sm:$0xf]
    %v52 = vld [vmem:[%s1 + $0x5c] sm:$0xf]
    %v53 = vld [vmem:[%s1 + $0x60] sm:$0xf]
    %v54 = vld [vmem:[%s1 + $0x64] sm:$0xf]
    %v55 = vld [vmem:[%s1 + $0x68] sm:$0xf]
    %v56 = vld [vmem:[%s1 + $0x6c] sm:$0xf]
    %v57 = vld [vmem:[%s1 + $0x70] sm:$0xf]
    %v58 = vld [vmem:[%s1 + $0x74] sm:$0xf]
    %v59 = vld [vmem:[%s1 + $0x78] sm:$0xf]
    %v60 = vld [vmem:[%s1 + $0x7c] sm:$0xf]
    %v61 = vld [vmem:[%s1 + $0x80] sm:$0xf]
    %v62 = vld [vmem:[%s1 + $0x84] sm:$0xf]
    %v63 = vld [vmem:[%s1 + $0x88] sm:$0xf]
    %v64 = vld [vmem:[%s1 + $0x8c] sm:$0xf]
    %v65 = vld [vmem:[%s1 + $0x90] sm:$0xf]
    %v66 = vld [vmem:[%s1 + $0x94] sm:$0xf]
    %v67 = vld [vmem:[%s1 + $0x98] sm:$0xf]
    %v68 = vld [vmem:[%s1 + $0x9c] sm:$0xf]
    %v69 = vld [vmem:[%s1 + $0xa0] sm:$0xf]
    %v70 = vld [vmem:[%s1 + $0xa4] sm:$0xf]
    %v71 = vld [vmem:[%s1 + $0xa8] sm:$0xf]
    %v72 = vld [vmem:[%s1 + $0xac] sm:$0xf]
    %v73 = vld [vmem:[%s1 + $0xb0] sm:$0xf]
    %v74 = vld [vmem:[%s1 + $0xb4] sm:$0xf]
    %v75 = vld [vmem:[%s1 + $0xb8] sm:$0xf]
    %v76 = vld [vmem:[%s1 + $0xbc] sm:$0xf]
    %v77 = vld [vmem:[%s1 + $0xc0] sm:$0xf]
    %v78 = vld [vmem:[%s1 + $0xc4] sm:$0xf]
    %v79 = vld [vmem:[%s1 + $0xc8] sm:$0xf]
    %v80 = vld [vmem:[%s1 + $0xcc] sm:$0xf]
    %v81 = vld [vmem:[%s1 + $0xd0] sm:$0xf]
    %v82 = vld [vmem:[%s1 + $0xd4] sm:$0xf]
    %v83 = vld [vmem:[%s1 + $0xd8] sm:$0xf]
    %v84 = vld [vmem:[%s1 + $0xdc] sm:$0xf]
    %v85 = vld [vmem:[%s1 + $0xe0] sm:$0xf]
    %v86 = vld [vmem:[%s1 + $0xe4] sm:$0xf]
    %v87 = vld [vmem:[%s1 + $0xe8] sm:$0xf]
    %v88 = vld [vmem:[%s1 + $0xec] sm:$0xf]
    %v89 = vld [vmem:[%s1 + $0xf0] sm:$0xf]
    %v90 = vld [vmem:[%s1 + $0xf4] sm:$0xf]
    %v91 = vld [vmem:[%s1 + $0xf8] sm:$0xf]
    %v92 = vld [vmem:[%s1 + $0xfc] sm:$0xf]
    %v93 = vld [vmem:[%s1 + $0x100] sm:$0xf]
    %v94 = vld [vmem:[%s1 + $0x104] sm:$0xf]
    %v95 = vld [vmem:[%s1 + $0x108] sm:$0xf]
    %v96 = vld [vmem:[%s1 + $0x10c] sm:$0xf]
    %v97 = vld [vmem:[%s1 + $0x110] sm:$0xf]
    %v98 = vld [vmem:[%s1 + $0x114] sm:$0xf]
    %v99 = vld [vmem:[%s1 + $0x118] sm:$0xf]
    %v100 = vld [vmem:[%s1 + $0x11c] sm:$0xf]
    %v101 = vld [vmem:[%s1 + $0x120] sm:$0xf]
    %v102 = vld [vmem:[%s1 + $0x124] sm:$0xf]
    %v103 = vld [vmem:[%s1 + $0x128] sm:$0xf]
    %v104 = vld [vmem:[%s1 + $0x12c] sm:$0xf]
    %v105 = vld [vmem:[%s1 + $0x130] sm:$0xf]
    %v106 = vld [vmem:[%s1 + $0x134] sm:$0xf]
    %v107 = vld [vmem:[%s1 + $0x138] sm:$0xf]
    %v108 = vld [vmem:[%s1 + $0x13c] sm:$0xf]
    %v109 = vld [vmem:[%s1 + $0x140] sm:$0xf]
    %v110 = vld [vmem:[%s1 + $0x144] sm:$0xf]
    %v111 = vld [vmem:[%s1 + $0x148] sm:$0xf]
    %v112 = vld [vmem:[%s1 + $0x14c] sm:$0xf]
    %v113 = vld [vmem:[%s1 + $0x150] sm:$0xf]
    %v114 = vld [vmem:[%s1 + $0x154] sm:$0xf]
    %v115 = vld [vmem:[%s1 + $0x158] sm:$0xf]
    %v116 = vld [vmem:[%s1 + $0x15c] sm:$0xf]
    %v117 = vld [vmem:[%s1 + $0x160] sm:$0xf]
    %v118 = vld [vmem:[%s1 + $0x164] sm:$0xf]
    %v119 = vld [vmem:[%s1 + $0x168] sm:$0xf]
    %v120 = vld [vmem:[%s1 + $0x16c] sm:$0xf]
    %v121 = vld [vmem:[%s1 + $0x170] sm:$0xf]
    %v122 = vld [vmem:[%s1 + $0x174] sm:$0xf]
    %v123 = vld [vmem:[%s1 + $0x178] sm:$0xf]
    %v124 = vld [vmem:[%s1 + $0x17c] sm:$0xf]
    %v125 = vld [vmem:[%s1 + $0x180] sm:$0xf]
    %v126 = vld [vmem:[%s1 + $0x184] sm:$0xf]
    %128 = vst [vmem:[#allocation1] ss:$9 sm:$0xff] %v28
    %v129 = vld [vmem:[#allocation1] sm:$0xff]
    %v130 = vld [vmem:[#allocation1 + $0x9] sm:$0xff]
    %v131 = vld [vmem:[#allocation1 + $0x12] sm:$0xff]
    %v132 = vld [vmem:[#allocation1 + $0x1b] sm:$0xff]
    %v133 = vld [vmem:[#allocation1 + $0x24] sm:$0xff]
    %v134 = vld [vmem:[#allocation1 + $0x2d] sm:$0xff]
    %v135 = vld [vmem:[#allocation1 + $0x36] sm:$0xff]
    %v240 = vunpack.c.l.b16 %v29
    %v241 = vunpack.c.l.b16 %v30
    %v242 = vunpack.c.l.b16 %v31
    %v243 = vunpack.c.l.b16 %v32
    %v244 = vunpack.c.l.b16 %v33
    %v245 = vunpack.c.l.b16 %v34
    %v246 = vunpack.c.l.b16 %v35
    %v247 = vunpack.c.l.b16 %v36
    %v248 = vunpack.c.l.b16 %v37
    %v249 = vunpack.c.l.b16 %v38
    %v250 = vunpack.c.l.b16 %v39
    %v251 = vunpack.c.l.b16 %v40
    %v252 = vunpack.c.l.b16 %v41
    %v253 = vunpack.c.l.b16 %v42
    %v254 = vunpack.c.l.b16 %v43
    %v255 = vunpack.c.l.b16 %v44
    %v256 = vunpack.c.l.b16 %v45
    %v257 = vunpack.c.l.b16 %v46
    %v258 = vunpack.c.l.b16 %v47
    %v259 = vunpack.c.l.b16 %v48
    %v260 = vunpack.c.l.b16 %v49
    %v261 = vunpack.c.l.b16 %v50
    %v262 = vunpack.c.l.b16 %v51
    %v263 = vunpack.c.l.b16 %v52
    %v264 = vunpack.c.l.b16 %v53
    %v265 = vunpack.c.l.b16 %v54
    %v266 = vunpack.c.l.b16 %v55
    %v267 = vunpack.c.l.b16 %v56
    %v268 = vunpack.c.l.b16 %v57
    %v269 = vunpack.c.l.b16 %v58
    %v270 = vunpack.c.l.b16 %v59
    %v271 = vunpack.c.l.b16 %v60
    %v272 = vunpack.c.l.b16 %v61
    %v273 = vunpack.c.l.b16 %v62
    %v274 = vunpack.c.l.b16 %v63
    %v275 = vunpack.c.l.b16 %v64
    %v276 = vunpack.c.l.b16 %v65
    %v277 = vunpack.c.l.b16 %v66
    %v278 = vunpack.c.l.b16 %v67
    %v279 = vunpack.c.l.b16 %v68
    %v280 = vunpack.c.l.b16 %v69
    %v281 = vunpack.c.l.b16 %v70
    %v282 = vunpack.c.l.b16 %v71
    %v283 = vunpack.c.l.b16 %v72
    %v284 = vunpack.c.l.b16 %v73
    %v285 = vunpack.c.l.b16 %v74
    %v286 = vunpack.c.l.b16 %v75
    %v287 = vunpack.c.l.b16 %v76
    %v288 = vunpack.c.l.b16 %v77
    %v289 = vunpack.c.l.b16 %v78
    %v290 = vunpack.c.l.b16 %v79
    %v291 = vunpack.c.l.b16 %v80
    %v292 = vunpack.c.l.b16 %v81
    %v293 = vunpack.c.l.b16 %v82
    %v294 = vunpack.c.l.b16 %v83
    %v295 = vunpack.c.l.b16 %v84
    %v296 = vunpack.c.l.b16 %v85
    %v297 = vunpack.c.l.b16 %v86
    %v298 = vunpack.c.l.b16 %v87
    %v299 = vunpack.c.l.b16 %v88
    %v300 = vunpack.c.l.b16 %v89
    %v301 = vunpack.c.l.b16 %v90
    %v302 = vunpack.c.l.b16 %v91
    %v303 = vunpack.c.l.b16 %v92
    %v304 = vunpack.c.l.b16 %v93
    %v305 = vunpack.c.l.b16 %v94
    %v306 = vunpack.c.l.b16 %v95
    %v307 = vunpack.c.l.b16 %v96
    %v308 = vunpack.c.l.b16 %v97
    %v309 = vunpack.c.l.b16 %v98
    %v310 = vunpack.c.l.b16 %v99
    %v311 = vunpack.c.l.b16 %v100
    %v312 = vunpack.c.l.b16 %v101
    %v313 = vunpack.c.l.b16 %v102
    %v314 = vunpack.c.l.b16 %v103
    %v315 = vunpack.c.l.b16 %v104
    %v316 = vunpack.c.l.b16 %v105
    %v317 = vunpack.c.l.b16 %v106
    %v318 = vunpack.c.l.b16 %v107
    %v319 = vunpack.c.l.b16 %v108
    %v320 = vunpack.c.l.b16 %v109
    %v321 = vunpack.c.l.b16 %v110
    %v322 = vunpack.c.l.b16 %v111
    %v323 = vunpack.c.l.b16 %v112
    %v324 = vunpack.c.l.b16 %v113
    %v325 = vunpack.c.l.b16 %v114
    %v326 = vunpack.c.l.b16 %v115
    %v327 = vunpack.c.l.b16 %v116
    %v328 = vunpack.c.l.b16 %v117
    %v329 = vunpack.c.l.b16 %v118
    %v330 = vunpack.c.l.b16 %v119
    %v331 = vunpack.c.l.b16 %v120
    %v332 = vunpack.c.l.b16 %v121
    %v333 = vunpack.c.l.b16 %v122
    %v334 = vunpack.c.l.b16 %v123
    %v335 = vunpack.c.l.b16 %v124
    %v336 = vunpack.c.l.b16 %v125
    %v337 = vunpack.c.l.b16 %v126
    %v338 = vpack.c.b16 %v241, %v240
    %v339 = vpack.c.b16 %v243, %v242
    %v340 = vpack.c.b16 %v245, %v244
    %v341 = vpack.c.b16 %v247, %v246
    %v342 = vpack.c.b16 %v249, %v248
    %v343 = vpack.c.b16 %v251, %v250
    %v344 = vpack.c.b16 %v253, %v252
    %v345 = vpack.c.b16 %v255, %v254
    %v346 = vpack.c.b16 %v257, %v256
    %v347 = vpack.c.b16 %v259, %v258
    %v348 = vpack.c.b16 %v261, %v260
    %v349 = vpack.c.b16 %v263, %v262
    %v350 = vpack.c.b16 %v265, %v264
    %v351 = vpack.c.b16 %v267, %v266
    %v352 = vpack.c.b16 %v269, %v268
    %v353 = vpack.c.b16 %v271, %v270
    %v354 = vpack.c.b16 %v273, %v272
    %v355 = vpack.c.b16 %v275, %v274
    %v356 = vpack.c.b16 %v277, %v276
    %v357 = vpack.c.b16 %v279, %v278
    %v358 = vpack.c.b16 %v281, %v280
    %v359 = vpack.c.b16 %v283, %v282
    %v360 = vpack.c.b16 %v285, %v284
    %v361 = vpack.c.b16 %v287, %v286
    %v362 = vpack.c.b16 %v289, %v288
    %v363 = vpack.c.b16 %v291, %v290
    %v364 = vpack.c.b16 %v293, %v292
    %v365 = vpack.c.b16 %v295, %v294
    %v366 = vpack.c.b16 %v297, %v296
    %v367 = vpack.c.b16 %v299, %v298
    %v368 = vpack.c.b16 %v301, %v300
    %v369 = vpack.c.b16 %v303, %v302
    %v370 = vpack.c.b16 %v305, %v304
    %v371 = vpack.c.b16 %v307, %v306
    %v372 = vpack.c.b16 %v309, %v308
    %v373 = vpack.c.b16 %v311, %v310
    %v374 = vpack.c.b16 %v313, %v312
    %v375 = vpack.c.b16 %v315, %v314
    %v376 = vpack.c.b16 %v317, %v316
    %v377 = vpack.c.b16 %v319, %v318
    %v378 = vpack.c.b16 %v321, %v320
    %v379 = vpack.c.b16 %v323, %v322
    %v380 = vpack.c.b16 %v325, %v324
    %v381 = vpack.c.b16 %v327, %v326
    %v382 = vpack.c.b16 %v329, %v328
    %v383 = vpack.c.b16 %v331, %v330
    %v384 = vpack.c.b16 %v333, %v332
    %v385 = vpack.c.b16 %v335, %v334
    %v386 = vpack.c.b16 %v337, %v336
    %vm436 = vcmask 130048
    %v437 = vsel %vm436, %v135, 0
    %439 = vmatpush.bf16.msra.mxu0 %v345
    %440 = vmatpush.bf16.msra.mxu0 %v344
    %441 = vmatpush.bf16.msra.mxu0 %v343
    %442 = vmatpush.bf16.msra.mxu0 %v342
    %443 = vmatpush.bf16.msra.mxu0 %v341
    %444 = vmatpush.bf16.msra.mxu0 %v340
    %445 = vmatpush.bf16.msra.mxu0 %v339
    %446 = vmatpush.bf16.msra.mxu0 %v338
    %447 = vmatmul.bf16.gmra.mxu0 %v129
    %v448 = vpop.f32.mrf.mxu0
    %v449 = vadd.f32 0.0, %v448
    %v450 = vpop.f32.mrf.mxu0
    %451 = vdwg.mxu0
    %452 = vmatpush.bf16.msra.mxu0 %v353
    %453 = vmatpush.bf16.msra.mxu0 %v352
    %454 = vmatpush.bf16.msra.mxu0 %v351
    %455 = vmatpush.bf16.msra.mxu0 %v350
    %456 = vmatpush.bf16.msra.mxu0 %v349
    %457 = vmatpush.bf16.msra.mxu0 %v348
    %458 = vmatpush.bf16.msra.mxu0 %v347
    %459 = vmatpush.bf16.msra.mxu0 %v346
    %460 = vmatmul.bf16.gmra.mxu0 %v130
    %v461 = vpop.f32.mrf.mxu0
    %v462 = vadd.f32 %v449, %v461
    %v463 = vpop.f32.mrf.mxu0
    %464 = vdwg.mxu0
    %465 = vmatpush.bf16.msra.mxu0 %v361
    %466 = vmatpush.bf16.msra.mxu0 %v360
    %467 = vmatpush.bf16.msra.mxu0 %v359
    %468 = vmatpush.bf16.msra.mxu0 %v358
    %469 = vmatpush.bf16.msra.mxu0 %v357
    %470 = vmatpush.bf16.msra.mxu0 %v356
    %471 = vmatpush.bf16.msra.mxu0 %v355
    %472 = vmatpush.bf16.msra.mxu0 %v354
    %473 = vmatmul.bf16.gmra.mxu0 %v131
    %v474 = vpop.f32.mrf.mxu0
    %v475 = vadd.f32 %v462, %v474
    %v476 = vpop.f32.mrf.mxu0
    %477 = vdwg.mxu0
    %478 = vmatpush.bf16.msra.mxu0 %v369
    %479 = vmatpush.bf16.msra.mxu0 %v368
    %480 = vmatpush.bf16.msra.mxu0 %v367
    %481 = vmatpush.bf16.msra.mxu0 %v366
    %482 = vmatpush.bf16.msra.mxu0 %v365
    %483 = vmatpush.bf16.msra.mxu0 %v364
    %484 = vmatpush.bf16.msra.mxu0 %v363
    %485 = vmatpush.bf16.msra.mxu0 %v362
    %486 = vmatmul.bf16.gmra.mxu0 %v132
    %v487 = vpop.f32.mrf.mxu0
    %v488 = vadd.f32 %v475, %v487
    %v489 = vpop.f32.mrf.mxu0
    %490 = vdwg.mxu0
    %491 = vmatpush.bf16.msra.mxu0 %v377
    %492 = vmatpush.bf16.msra.mxu0 %v376
    %493 = vmatpush.bf16.msra.mxu0 %v375
    %494 = vmatpush.bf16.msra.mxu0 %v374
    %495 = vmatpush.bf16.msra.mxu0 %v373
    %496 = vmatpush.bf16.msra.mxu0 %v372
    %497 = vmatpush.bf16.msra.mxu0 %v371
    %498 = vmatpush.bf16.msra.mxu0 %v370
    %499 = vmatmul.bf16.gmra.mxu0 %v133
    %v500 = vpop.f32.mrf.mxu0
    %v501 = vadd.f32 %v488, %v500
    %v502 = vpop.f32.mrf.mxu0
    %503 = vdwg.mxu0
    %504 = vmatpush.bf16.msra.mxu0 %v385
    %505 = vmatpush.bf16.msra.mxu0 %v384
    %506 = vmatpush.bf16.msra.mxu0 %v383
    %507 = vmatpush.bf16.msra.mxu0 %v382
    %508 = vmatpush.bf16.msra.mxu0 %v381
    %509 = vmatpush.bf16.msra.mxu0 %v380
    %510 = vmatpush.bf16.msra.mxu0 %v379
    %511 = vmatpush.bf16.msra.mxu0 %v378
    %512 = vmatmul.bf16.gmra.mxu0 %v134
    %v513 = vpop.f32.mrf.mxu0
    %v514 = vadd.f32 %v501, %v513
    %v515 = vpop.f32.mrf.mxu0
    %516 = vdwg.mxu0
    %517 = vmatpush.bf16.msra.mxu0 0
    %518 = vmatpush.bf16.msra.mxu0 0
    %519 = vmatpush.bf16.msra.mxu0 0
    %520 = vmatpush.bf16.msra.mxu0 0
    %521 = vmatpush.bf16.msra.mxu0 0
    %522 = vmatpush.bf16.msra.mxu0 0
    %523 = vmatpush.bf16.msra.mxu0 0
    %524 = vmatpush.bf16.msra.mxu0 %v386
    %525 = vmatmul.bf16.gmra.mxu0 %v437
    %v526 = vpop.f32.mrf.mxu0
    %v527 = vadd.f32 %v514, %v526
    %v528 = vpop.f32.mrf.mxu0
    %529 = vdwg.mxu0
    %v530 = vld [vmem:[%s2] sm:$0x1]
    %v532 = vperm.slane %v530, 0
    %v534 = vmul.f32 %v527, %v532
    %v535 = vld [vmem:[%s3] sm:$0x1]
    %v537 = vperm.slane %v535, 0
    %v539 = vadd.f32 %v534, %v537
    %v540 = vtanh.pop %v539
    %vm541 = vcmp.gt.f32.partialorder %v540, 0.0
    %vm542 = vcmp.lt.f32.partialorder %v540, 0.0
    %v543 = vsel %vm542, -1.0, 0.0
    %v544 = vsel %vm541, 1.0, %v543
    %v545 = vpack.c.bf16 %v544, %v544
    %v546 = vld [vmem:[%s4] sm:$0xf]
    %v547 = vld [vmem:[%s4 + $0x4] sm:$0xf]
    %v548 = vld [vmem:[%s4 + $0x8] sm:$0xf]
    %v549 = vld [vmem:[%s4 + $0xc] sm:$0xf]
    %v550 = vld [vmem:[%s4 + $0x10] sm:$0xf]
    %v551 = vld [vmem:[%s4 + $0x14] sm:$0xf]
    %v552 = vld [vmem:[%s4 + $0x18] sm:$0xf]
    %v553 = vld [vmem:[%s4 + $0x1c] sm:$0xf]
    %v554 = vld [vmem:[%s4 + $0x20] sm:$0xf]
    %v555 = vld [vmem:[%s4 + $0x24] sm:$0xf]
    %v556 = vld [vmem:[%s4 + $0x28] sm:$0xf]
    %v557 = vld [vmem:[%s4 + $0x2c] sm:$0xf]
    %v558 = vld [vmem:[%s4 + $0x30] sm:$0xf]
    %v559 = vld [vmem:[%s4 + $0x34] sm:$0xf]
    %v560 = vld [vmem:[%s4 + $0x38] sm:$0xf]
    %v561 = vld [vmem:[%s4 + $0x3c] sm:$0xf]
    %v578 = vunpack.c.l.b16 %v546
    %v579 = vunpack.c.l.b16 %v547
    %v580 = vunpack.c.l.b16 %v548
    %v581 = vunpack.c.l.b16 %v549
    %v582 = vunpack.c.l.b16 %v550
    %v583 = vunpack.c.l.b16 %v551
    %v584 = vunpack.c.l.b16 %v552
    %v585 = vunpack.c.l.b16 %v553
    %v586 = vunpack.c.l.b16 %v554
    %v587 = vunpack.c.l.b16 %v555
    %v588 = vunpack.c.l.b16 %v556
    %v589 = vunpack.c.l.b16 %v557
    %v590 = vunpack.c.l.b16 %v558
    %v591 = vunpack.c.l.b16 %v559
    %v592 = vunpack.c.l.b16 %v560
    %v593 = vunpack.c.l.b16 %v561
    %v594 = vpack.c.b16 %v579, %v578
    %v595 = vpack.c.b16 %v581, %v580
    %v596 = vpack.c.b16 %v583, %v582
    %v597 = vpack.c.b16 %v585, %v584
    %v598 = vpack.c.b16 %v587, %v586
    %v599 = vpack.c.b16 %v589, %v588
    %v600 = vpack.c.b16 %v591, %v590
    %v601 = vpack.c.b16 %v593, %v592
    %610 = vmatpush.bf16.msra.mxu0 %v601
    %611 = vmatpush.bf16.msra.mxu0 %v600
    %612 = vmatpush.bf16.msra.mxu0 %v599
    %613 = vmatpush.bf16.msra.mxu0 %v598
    %614 = vmatpush.bf16.msra.mxu0 %v597
    %615 = vmatpush.bf16.msra.mxu0 %v596
    %616 = vmatpush.bf16.msra.mxu0 %v595
    %617 = vmatpush.bf16.msra.mxu0 %v594
    %618 = vmatmul.bf16.gmra.mxu0 %v545
    %v619 = vpop.f32.mrf.mxu0
    %v620 = vadd.f32 0.0, %v619
    %v621 = vpop.f32.mrf.mxu0
    %622 = vdwg.mxu0
    %v623 = vld [vmem:[%s5] sm:$0x1]
    %v625 = vperm.slane %v623, 0
    %v627 = vmul.f32 %v620, %v625
    %v628 = vld [vmem:[%s6] sm:$0x1]
    %v630 = vperm.slane %v628, 0
    %v632 = vadd.f32 %v627, %v630
    %v633 = vlaneseq
    %v634 = vand.u32 %v633, 127
    %vm635 = vcmp.lt.s32.totalorder %v634, 10
    %v636 = vsel %vm635, %v632, -inf
    %vm637 = vcmask 1041408
    %v638 = vsel %vm637, %v636, -inf
    %639 = vmax.xlane.f32.xlu0 %v638
    %v640 = vpop.xlane.xlu0 %639
    %v641 = vsub.f32 %v636, %v640
    %v642 = vmul.f32 %v641, 1.442695
    %v643 = vpow.pop %v642
    %v644 = vsel %vm635, %v643, 0.0
    %v645 = vsel %vm637, %v644, 0.0
    %646 = vadd.xlane.f32.xlu0 %v645
    %v647 = vpop.xlane.xlu0 %646
    %v648 = vlog2.pop %v647
    %v649 = vmul.f32 %v648, 0.6931472
    %v650 = vsub.f32 %v641, %v649
    %651 = vst [vmem:[#allocation2] sm:$0x3] %v650
    // Predicated region
    $region30: #{net_forward.5} parent=1 // pred_check
      _
    $region31: #{net_forward.5} parent=1 // pred_check_branch
      %653 = sbr.rel (0) target = $region33
    $region32: #{net_forward.5} parent=1 // pred_region
      %655 = vsyncadd [#allocation3], 0
      %s657 = sshll.u32 [#allocation2], 4
      %s658 = int_to_ptr.vmem [resolvable:$true] %s657
      %s659 = sshll.u32 %s7, 4
      %s660 = int_to_ptr.hbm [resolvable:$true] %s659
      %662 = dma.vmem_to_hbm [thread:$0]  %s658, 32, %s660, [#allocation3]
    $region33: #{net_forward.5} parent=1 // pred_fallthru
      _
    // Predicated region
    $region34: #{net_forward.5} parent=1 // pred_check
      _
    $region35: #{net_forward.5} parent=1 // pred_check_branch
      %664 = sbr.rel (0) target = $region37
    $region36: #{net_forward.5} parent=1 // pred_region
      %666 = dma.done [#allocation3], 32
    $region37: #{net_forward.5} parent=1 // pred_fallthru
      _
    %667 = vsyncpa [#allocation3], 1

</llo_original>
